<compile_context>
chip_gen: v6e
topology: v6e:2x2x1
jax: 0.10.0
libtpu: 0.0.40
codegen_flags: <defaults>
</compile_context>

<pallas_src>
import math

import jax
import jax.numpy as jnp
from jax import lax
from jax.experimental import pallas as pl
from jax.experimental.pallas import tpu as pltpu

# ----- model hyper-parameters (small, consistent with the module) -----------
D_MODEL = 32
NUM_HEADS = 4
D_K = D_MODEL // NUM_HEADS
D_FF = 64
NUM_LAYERS = 2
EPS = 1e-5
NEG_FILL = -1e9          # matches masked_fill(mask, -1000000000.0)
_CA_STRIDE = 128         # per-layer lane stride of the hoisted cross K/V slab


# ------------------------------- kernel --------------------------------------
def decoder_kernel(x_ref, mem_ref, sbias_ref, cbias_ref,
                   s_hm_ref, s_bd_ref, c_hm_ref, c_bd_ref,
                   w_sa_q_ref, w_sa_vk_ref, w_sa_o_ref,
                   w_ca_q_ref, w_ca_vk_ref, w_ca_o_ref,
                   w_ff1_ref, w_ff2_ref, wvec_ref, out_ref):
    f32, bf16 = jnp.float32, jnp.bfloat16
    ct_last = (((1,), (1,)), ((), ()))        # contract last dims of both

    x = x_ref[...]                            # (N, D)      f32 activations
    sbias = sbias_ref[...]                    # (N, H*Nk)   additive 0/-1e9, head-tiled
    cbias = cbias_ref[...]                    # (N, H*Nm)
    s_hm = s_hm_ref[...]                      # (H*Nk, 2D)  head-block column mask [V|K]
    c_hm = c_hm_ref[...]                      # (H*Nm, 2D)
    s_bd = s_bd_ref[...]                      # (H*Nk, H*Nk) block-diag ones (bf16)
    c_bd = c_bd_ref[...]

    def layer_norm(v, g, b):
        # var = E[x^2] - mu^2: the two cross-lane reductions are independent
        # and can overlap on the XLU units.  Biased variance, eps=1e-5.
        mu = jnp.mean(v, axis=-1, keepdims=True)
        ms = jnp.mean(v * v, axis=-1, keepdims=True)
        var = ms - mu * mu
        return (v - mu) * lax.rsqrt(var + EPS) * g + b

    def head_pack(vk_small, hm):
        # (Nk, 2D) -> (H*Nk, 2D): replicate per head block along sublanes and
        # zero every column not owned by that block's head.
        rep = jnp.concatenate([vk_small] * NUM_HEADS, axis=0)
        return (rep * hm).astype(bf16)

    def attention(q_pad, vk_packed, bias, bd, wo):
        # q_pad     (N, 2D)     bf16 = [0 | Q/sqrt(dk)]
        # vk_packed (H*Nk, 2D)  bf16 = [V_packed | K_packed]
        # All-head scores in ONE matmul (q's V half is zero, so only K contracts).
        s = lax.dot_general(q_pad, vk_packed, ct_last, preferred_element_type=f32)
        # No row-max subtraction: scores are O(1) for this model; masked entries
        # carry -1e9 whose exp underflows to exactly 0 in f32.
        p = jnp.exp(s + bias)                                        # (N, H*Nk)
        # Per-(row, head-block) softmax denominator via one matmul against the
        # block-diagonal ones matrix instead of per-head XLU reductions.
        denom = jnp.dot(p.astype(bf16), bd, preferred_element_type=f32)
        pn = (p * pl.reciprocal(denom, approx=True)).astype(bf16)    # EUP slot
        # PV matmul: contraction performs the head sum.  Lanes [0, D) are
        # concat(heads); lanes [D, 2D) are P @ K_packed junk, never read.
        ov = jnp.dot(pn, vk_packed, preferred_element_type=f32)
        return jnp.dot(ov[:, 0:D_MODEL].astype(bf16), wo,
                       preferred_element_type=f32)

    # --- hoisted: cross-attention K/V for ALL layers (memory is layer-invariant)
    mem_bf = mem_ref[...].astype(bf16)                               # (Nm, D)
    ckv_all = jnp.dot(mem_bf, w_ca_vk_ref[...],
                      preferred_element_type=f32)                    # (Nm, L*128)
    ckv_rep = jnp.concatenate([ckv_all] * NUM_HEADS, axis=0)         # (H*Nm, L*128)
    num_layers = w_sa_q_ref.shape[0]
    ca_vk = [
        (ckv_rep[:, l * _CA_STRIDE: l * _CA_STRIDE + 2 * D_MODEL] * c_hm
         ).astype(bf16)
        for l in range(num_layers)
    ]

    for l in range(num_layers):                                      # static unroll
        vec = wvec_ref[l]                                            # (8, 64) f32
        b1 = vec[0:1, :]                                             # (1, 64)
        b2 = vec[1:2, 0:D_MODEL]
        g1, be1 = vec[2:3, 0:D_MODEL], vec[3:4, 0:D_MODEL]
        g2, be2 = vec[4:5, 0:D_MODEL], vec[5:6, 0:D_MODEL]
        g3, be3 = vec[6:7, 0:D_MODEL], vec[7:8, 0:D_MODEL]

        # ---- masked multi-head self-attention + residual + norm1 ----
        x_bf = x.astype(bf16)
        q_pad = jnp.dot(x_bf, w_sa_q_ref[l],
                        preferred_element_type=f32).astype(bf16)     # (N, 2D)
        vk = jnp.dot(x_bf, w_sa_vk_ref[l],
                     preferred_element_type=f32)                     # (N, 2D) = [V | K]
        sa = attention(q_pad, head_pack(vk, s_hm), sbias, s_bd, w_sa_o_ref[l])
        x = layer_norm(x + sa, g1, be1)

        # ---- multi-head cross-attention (kv = memory) + residual + norm2 ----
        x_bf = x.astype(bf16)
        q_pad_c = jnp.dot(x_bf, w_ca_q_ref[l],
                          preferred_element_type=f32).astype(bf16)
        ca = attention(q_pad_c, ca_vk[l], cbias, c_bd, w_ca_o_ref[l])
        x = layer_norm(x + ca, g2, be2)

        # ---- feed-forward network + residual + norm3 ----
        x_bf = x.astype(bf16)
        h = jnp.dot(x_bf, w_ff1_ref[l], preferred_element_type=f32) + b1
        h = jnp.maximum(h, 0.0)
        f = jnp.dot(h.astype(bf16), w_ff2_ref[l],
                    preferred_element_type=f32) + b2
        x = layer_norm(x + f, g3, be3)

    out_ref[...] = x


# ------------------------------ host wrapper ----------------------------------
@jax.jit
def decoder_forward(x, memory, sbias, cbias, s_hm2, s_bd, c_hm2, c_bd, params):
    """x: (B,S,D) f32, memory: (B,SM,D) f32; biases / packing constants and
    packed params are host-precomputed (see make_attn_bias,
    attention_packing_consts, pack_decoder_params)."""
    B, S, D = x.shape
    SM = memory.shape[1]
    assert D == D_MODEL

    xf = x.reshape(B * S, D)
    memf = memory.reshape(B * SM, D)

    vmem = pl.BlockSpec(memory_space=pltpu.MemorySpace.VMEM)
    operands = (xf, memf, sbias, cbias, s_hm2, s_bd, c_hm2, c_bd,
                params["w_sa_q"], params["w_sa_vk"], params["w_sa_o"],
                params["w_ca_q"], params["w_ca_vk"], params["w_ca_o"],
                params["w_ff1"], params["w_ff2"], params["wvec"])
    out_flat = pl.pallas_call(
        decoder_kernel,
        out_shape=jax.ShapeDtypeStruct((B * S, D), jnp.float32),
        in_specs=[vmem] * len(operands),
        out_specs=vmem,
    )(*operands)
    return out_flat.reshape(B, S, D)


# ------------------------- host-side packing helpers ---------------------------
def attention_packing_consts(nk):
    """Constants for head-packed attention with `nk` flattened key rows.
    hm2: (H*nk, 2D) f32 — keeps only head h's columns in packed row block h,
         duplicated for the [V | K] halves.
    bd : (H*nk, H*nk) bf16 — block-diagonal ones; P @ bd gives per-head softmax
         denominators already broadcast back to full lane width."""
    r = jnp.arange(NUM_HEADS * nk)
    d = jnp.arange(D_MODEL)
    hm = (d[None, :] // D_K == r[:, None] // nk).astype(jnp.float32)
    hm2 = jnp.concatenate([hm, hm], axis=1)
    bd = (r[None, :] // nk == r[:, None] // nk).astype(jnp.bfloat16)
    return hm2, bd


def make_attn_bias(mask, batch):
    """Additive attention bias: 0 where attendable, -1e9 where masked or
    cross-batch, flattened to (B*Sq, B*Sk) and tiled x NUM_HEADS along lanes to
    match the head-packed score layout."""
    sq, sk = mask.shape
    same_b = jnp.eye(batch, dtype=bool)[:, None, :, None]            # (B,1,B,1)
    bias = jnp.where(same_b & (mask[None, :, None, :] == 0), 0.0, NEG_FILL)
    bias = bias.astype(jnp.float32).reshape(batch * sq, batch * sk)
    return jnp.tile(bias, (1, NUM_HEADS))


def pack_decoder_params(layer_params):
    """Pack per-layer params into tile-friendly slabs.  Matmul weights are
    pre-cast to bf16 (single-pass MXU); biases / LN params stay f32."""
    inv = 1.0 / math.sqrt(D_K)
    bf = jnp.bfloat16
    zq = jnp.zeros((D_MODEL, D_MODEL), jnp.float32)
    zc = jnp.zeros((D_MODEL, _CA_STRIDE - 2 * D_MODEL), jnp.float32)
    z32 = jnp.zeros((1, D_MODEL), jnp.float32)

    def pad64(v):  # (1, 32) -> (1, 64)
        return jnp.concatenate([v, z32], axis=1)

    sa_q, sa_vk, sa_o = [], [], []
    ca_q, ca_vk, ca_o = [], [], []
    ff1, ff2, vecs = [], [], []
    for p in layer_params:
        sa_q.append(jnp.concatenate([zq, p["sa_wq"] * inv], axis=1))      # [0 | Wq*s]
        sa_vk.append(jnp.concatenate([p["sa_wv"], p["sa_wk"]], axis=1))   # [Wv | Wk]
        sa_o.append(p["sa_wo"])
        ca_q.append(jnp.concatenate([zq, p["ca_wq"] * inv], axis=1))
        ca_vk.append(jnp.concatenate([p["ca_wv"], p["ca_wk"], zc], axis=1))  # 128-lane block
        ca_o.append(p["ca_wo"])
        ff1.append(p["w1"])
        ff2.append(p["w2"])
        vecs.append(jnp.concatenate(
            [p["b1"], pad64(p["b2"]),
             pad64(p["ln1_g"]), pad64(p["ln1_b"]),
             pad64(p["ln2_g"]), pad64(p["ln2_b"]),
             pad64(p["ln3_g"]), pad64(p["ln3_b"])], axis=0))              # (8, 64)
    return dict(
        w_sa_q=jnp.stack(sa_q).astype(bf),          # (L, 32, 64)
        w_sa_vk=jnp.stack(sa_vk).astype(bf),        # (L, 32, 64)
        w_sa_o=jnp.stack(sa_o).astype(bf),          # (L, 32, 32)
        w_ca_q=jnp.stack(ca_q).astype(bf),          # (L, 32, 64)
        w_ca_vk=jnp.concatenate(ca_vk, axis=1).astype(bf),   # (32, L*128)
        w_ca_o=jnp.stack(ca_o).astype(bf),          # (L, 32, 32)
        w_ff1=jnp.stack(ff1).astype(bf),            # (L, 32, 64)
        w_ff2=jnp.stack(ff2).astype(bf),            # (L, 64, 32)
        wvec=jnp.stack(vecs),                       # (L, 8, 64) f32
    )


def make_layer_params(key):
    ks = jax.random.split(key, 18)

    def w(k, shape, scale=0.1):
        return scale * jax.random.normal(k, shape, dtype=jnp.float32)

    return {
        # attention projections stored [in, out] (nn.Linear: y = x @ W^T)
        "sa_wq": w(ks[0], (D_MODEL, D_MODEL)), "sa_wk": w(ks[1], (D_MODEL, D_MODEL)),
        "sa_wv": w(ks[2], (D_MODEL, D_MODEL)), "sa_wo": w(ks[3], (D_MODEL, D_MODEL)),
        "ca_wq": w(ks[4], (D_MODEL, D_MODEL)), "ca_wk": w(ks[5], (D_MODEL, D_MODEL)),
        "ca_wv": w(ks[6], (D_MODEL, D_MODEL)), "ca_wo": w(ks[7], (D_MODEL, D_MODEL)),
        # feed-forward network
        "w1": w(ks[8], (D_MODEL, D_FF)), "b1": w(ks[9], (1, D_FF)),
        "w2": w(ks[10], (D_FF, D_MODEL)), "b2": w(ks[11], (1, D_MODEL)),
        # layer norms
        "ln1_g": 1.0 + w(ks[12], (1, D_MODEL)), "ln1_b": w(ks[13], (1, D_MODEL)),
        "ln2_g": 1.0 + w(ks[14], (1, D_MODEL)), "ln2_b": w(ks[15], (1, D_MODEL)),
        "ln3_g": 1.0 + w(ks[16], (1, D_MODEL)), "ln3_b": w(ks[17], (1, D_MODEL)),
    }


# --------------------------- pure-JAX reference --------------------------------
def _ref_mha(q_in, kv_in, wq, wk, wv, wo, mask):
    B, Sq, _ = q_in.shape
    Sk = kv_in.shape[1]
    Q = (q_in @ wq).reshape(B, Sq, NUM_HEADS, D_K).transpose(0, 2, 1, 3)
    K = (kv_in @ wk).reshape(B, Sk, NUM_HEADS, D_K).transpose(0, 2, 1, 3)
    V = (kv_in @ wv).reshape(B, Sk, NUM_HEADS, D_K).transpose(0, 2, 1, 3)
    s = Q @ K.transpose(0, 1, 3, 2) / math.sqrt(D_K)
    s = jnp.where(mask[None, None], NEG_FILL, s)
    p = jax.nn.softmax(s, axis=-1)
    o = (p @ V).transpose(0, 2, 1, 3).reshape(B, Sq, D_MODEL)
    return o @ wo


def _ref_ln(v, g, b):
    mu = jnp.mean(v, axis=-1, keepdims=True)
    var = jnp.mean((v - mu) ** 2, axis=-1, keepdims=True)
    return (v - mu) / jnp.sqrt(var + EPS) * g + b


def _ref_decoder(x, mem, smask, cmask, layer_params):
    for p in layer_params:
        sa = _ref_mha(x, x, p["sa_wq"], p["sa_wk"], p["sa_wv"], p["sa_wo"],
                      smask != 0)
        x = _ref_ln(x + sa, p["ln1_g"], p["ln1_b"])
        ca = _ref_mha(x, mem, p["ca_wq"], p["ca_wk"], p["ca_wv"], p["ca_wo"],
                      cmask != 0)
        x = _ref_ln(x + ca, p["ln2_g"], p["ln2_b"])
        h = jnp.maximum(x @ p["w1"] + p["b1"], 0.0)
        f = h @ p["w2"] + p["b2"]
        x = _ref_ln(x + f, p["ln3_g"], p["ln3_b"])
    return x


# ----------------------------------- main --------------------------------------
if __name__ == "__main__":
    B, S, SM = 2, 8, 8

    root = jax.random.PRNGKey(0)
    k_layers, kx, km = jax.random.split(root, 3)
    layer_params = [make_layer_params(k)
                    for k in jax.random.split(k_layers, NUM_LAYERS)]

    x = jax.random.normal(kx, (B, S, D_MODEL), dtype=jnp.float32)
    memory = jax.random.normal(km, (B, SM, D_MODEL), dtype=jnp.float32)

    # masks: non-zero == "masked out" (same convention as masked_fill(mask, -1e9))
    row = jnp.arange(S)[:, None]
    col = jnp.arange(S)[None, :]
    self_mask = (col > row).astype(jnp.int32)                       # causal (S, S)
    cross_mask = jnp.zeros((S, SM), jnp.int32).at[:, -2:].set(1)    # pad last 2 mem slots
    # NOTE: every (query, head) block has >=1 unmasked key; a fully-masked row
    # would make the softmax denominator 0 and the approx reciprocal inf.

    # Host-precomputed, call-invariant constants (masks/shapes are static) —
    # built once, outside the jitted forward.
    sbias = make_attn_bias(self_mask, B)                   # (B*S, H*B*S)
    cbias = make_attn_bias(cross_mask, B)                  # (B*S, H*B*SM)
    s_hm2, s_bd = attention_packing_consts(B * S)
    c_hm2, c_bd = attention_packing_consts(B * SM)
    params = pack_decoder_params(layer_params)

    out = decoder_forward(x, memory, sbias, cbias, s_hm2, s_bd, c_hm2, c_bd,
                          params)
    out = jax.block_until_ready(out)

    ref = _ref_decoder(x, memory, self_mask, cross_mask, layer_params)
    assert out.shape == (B, S, D_MODEL)
    max_err = float(jnp.max(jnp.abs(out - ref)))
    # bf16 MXU operands (f32 accumulation) + the approximate EUP reciprocal give
    # expected abs error ~1e-3..1e-2 vs the f32 reference across 2 layers;
    # structural bugs would produce errors >> 1e-1.
    assert jnp.allclose(out, ref, atol=4e-2, rtol=4e-2), f"max abs err {max_err}"

    print("KERNEL_OK")
</pallas_src>

<mosaic_0001>
module attributes {stable_mosaic.version = 11 : i64} {
  func.func @decoder_kernel(%arg0: memref<16x32xf32, #tpu.memory_space<vmem>>, %arg1: memref<16x32xf32, #tpu.memory_space<vmem>>, %arg2: memref<16x64xf32, #tpu.memory_space<vmem>>, %arg3: memref<16x64xf32, #tpu.memory_space<vmem>>, %arg4: memref<64x64xf32, #tpu.memory_space<vmem>>, %arg5: memref<64x64xbf16, #tpu.memory_space<vmem>>, %arg6: memref<64x64xf32, #tpu.memory_space<vmem>>, %arg7: memref<64x64xbf16, #tpu.memory_space<vmem>>, %arg8: memref<2x32x64xbf16, #tpu.memory_space<vmem>>, %arg9: memref<2x32x64xbf16, #tpu.memory_space<vmem>>, %arg10: memref<2x32x32xbf16, #tpu.memory_space<vmem>>, %arg11: memref<2x32x64xbf16, #tpu.memory_space<vmem>>, %arg12: memref<32x256xbf16, #tpu.memory_space<vmem>>, %arg13: memref<2x32x32xbf16, #tpu.memory_space<vmem>>, %arg14: memref<2x32x64xbf16, #tpu.memory_space<vmem>>, %arg15: memref<2x64x32xbf16, #tpu.memory_space<vmem>>, %arg16: memref<2x8x64xf32, #tpu.memory_space<vmem>>, %arg17: memref<16x32xf32, #tpu.memory_space<vmem>>) attributes {dimension_semantics = [], scalar_prefetch = 0 : i64, scratch_operands = 0 : i64, tpu.core_type = #tpu.core_type<tc>} {
    %c0 = arith.constant 0 : index
    %c0_0 = arith.constant 0 : index
    %0 = vector.load %arg0[%c0, %c0_0] : memref<16x32xf32, #tpu.memory_space<vmem>>, vector<16x32xf32>
    %c0_1 = arith.constant 0 : index
    %c0_2 = arith.constant 0 : index
    %1 = vector.load %arg2[%c0_1, %c0_2] : memref<16x64xf32, #tpu.memory_space<vmem>>, vector<16x64xf32>
    %c0_3 = arith.constant 0 : index
    %c0_4 = arith.constant 0 : index
    %2 = vector.load %arg3[%c0_3, %c0_4] : memref<16x64xf32, #tpu.memory_space<vmem>>, vector<16x64xf32>
    %c0_5 = arith.constant 0 : index
    %c0_6 = arith.constant 0 : index
    %3 = vector.load %arg4[%c0_5, %c0_6] : memref<64x64xf32, #tpu.memory_space<vmem>>, vector<64x64xf32>
    %c0_7 = arith.constant 0 : index
    %c0_8 = arith.constant 0 : index
    %4 = vector.load %arg6[%c0_7, %c0_8] : memref<64x64xf32, #tpu.memory_space<vmem>>, vector<64x64xf32>
    %c0_9 = arith.constant 0 : index
    %c0_10 = arith.constant 0 : index
    %5 = vector.load %arg5[%c0_9, %c0_10] : memref<64x64xbf16, #tpu.memory_space<vmem>>, vector<64x64xbf16>
    %c0_11 = arith.constant 0 : index
    %c0_12 = arith.constant 0 : index
    %6 = vector.load %arg7[%c0_11, %c0_12] : memref<64x64xbf16, #tpu.memory_space<vmem>>, vector<64x64xbf16>
    %c0_13 = arith.constant 0 : index
    %c0_14 = arith.constant 0 : index
    %7 = vector.load %arg1[%c0_13, %c0_14] : memref<16x32xf32, #tpu.memory_space<vmem>>, vector<16x32xf32>
    %8 = arith.truncf %7 : vector<16x32xf32> to vector<16x32xbf16>
    %c0_15 = arith.constant 0 : index
    %c0_16 = arith.constant 0 : index
    %9 = vector.load %arg12[%c0_15, %c0_16] : memref<32x256xbf16, #tpu.memory_space<vmem>>, vector<32x256xbf16>
    %cst = arith.constant dense<0.000000e+00> : vector<16x256xf32>
    %10 = tpu.matmul %8, %9, %cst {dimension_numbers = #tpu.dot_dimension_numbers<[1], [0], [0], [1], [0, 0, 1, 1], [], []>} : vector<16x32xbf16>, vector<32x256xbf16>, vector<16x256xf32> -> vector<16x256xf32>
    %11 = tpu.concatenate %10, %10, %10, %10 in 0 : vector<16x256xf32>, vector<16x256xf32>, vector<16x256xf32>, vector<16x256xf32> -> vector<64x256xf32>
    %12 = vector.extract_strided_slice %11 {offsets = [0, 0], sizes = [64, 64], strides = [1, 1]} : vector<64x256xf32> to vector<64x64xf32>
    %13 = arith.mulf %12, %4 : vector<64x64xf32>
    %14 = arith.truncf %13 : vector<64x64xf32> to vector<64x64xbf16>
    %15 = vector.extract_strided_slice %11 {offsets = [0, 128], sizes = [64, 64], strides = [1, 1]} : vector<64x256xf32> to vector<64x64xf32>
    %16 = arith.mulf %15, %4 : vector<64x64xf32>
    %17 = arith.truncf %16 : vector<64x64xf32> to vector<64x64xbf16>
    %c0_17 = arith.constant 0 : index
    %c0_18 = arith.constant 0 : index
    %c0_19 = arith.constant 0 : index
    %18 = vector.load %arg16[%c0_17, %c0_18, %c0_19] : memref<2x8x64xf32, #tpu.memory_space<vmem>>, vector<1x8x64xf32>
    %19 = vector.shape_cast %18 : vector<1x8x64xf32> to vector<8x64xf32>
    %20 = vector.extract_strided_slice %19 {offsets = [0, 0], sizes = [1, 64], strides = [1, 1]} : vector<8x64xf32> to vector<1x64xf32>
    %21 = vector.extract_strided_slice %19 {offsets = [1, 0], sizes = [1, 32], strides = [1, 1]} : vector<8x64xf32> to vector<1x32xf32>
    %22 = vector.extract_strided_slice %19 {offsets = [2, 0], sizes = [1, 32], strides = [1, 1]} : vector<8x64xf32> to vector<1x32xf32>
    %23 = vector.extract_strided_slice %19 {offsets = [3, 0], sizes = [1, 32], strides = [1, 1]} : vector<8x64xf32> to vector<1x32xf32>
    %24 = vector.extract_strided_slice %19 {offsets = [4, 0], sizes = [1, 32], strides = [1, 1]} : vector<8x64xf32> to vector<1x32xf32>
    %25 = vector.extract_strided_slice %19 {offsets = [5, 0], sizes = [1, 32], strides = [1, 1]} : vector<8x64xf32> to vector<1x32xf32>
    %26 = vector.extract_strided_slice %19 {offsets = [6, 0], sizes = [1, 32], strides = [1, 1]} : vector<8x64xf32> to vector<1x32xf32>
    %27 = vector.extract_strided_slice %19 {offsets = [7, 0], sizes = [1, 32], strides = [1, 1]} : vector<8x64xf32> to vector<1x32xf32>
    %28 = arith.truncf %0 : vector<16x32xf32> to vector<16x32xbf16>
    %c0_20 = arith.constant 0 : index
    %c0_21 = arith.constant 0 : index
    %c0_22 = arith.constant 0 : index
    %29 = vector.load %arg8[%c0_20, %c0_21, %c0_22] : memref<2x32x64xbf16, #tpu.memory_space<vmem>>, vector<1x32x64xbf16>
    %30 = vector.shape_cast %29 : vector<1x32x64xbf16> to vector<32x64xbf16>
    %cst_23 = arith.constant dense<0.000000e+00> : vector<16x64xf32>
    %31 = tpu.matmul %28, %30, %cst_23 {dimension_numbers = #tpu.dot_dimension_numbers<[1], [0], [0], [1], [0, 0, 1, 1], [], []>} : vector<16x32xbf16>, vector<32x64xbf16>, vector<16x64xf32> -> vector<16x64xf32>
    %32 = arith.truncf %31 : vector<16x64xf32> to vector<16x64xbf16>
    %c0_24 = arith.constant 0 : index
    %c0_25 = arith.constant 0 : index
    %c0_26 = arith.constant 0 : index
    %33 = vector.load %arg9[%c0_24, %c0_25, %c0_26] : memref<2x32x64xbf16, #tpu.memory_space<vmem>>, vector<1x32x64xbf16>
    %34 = vector.shape_cast %33 : vector<1x32x64xbf16> to vector<32x64xbf16>
    %cst_27 = arith.constant dense<0.000000e+00> : vector<16x64xf32>
    %35 = tpu.matmul %28, %34, %cst_27 {dimension_numbers = #tpu.dot_dimension_numbers<[1], [0], [0], [1], [0, 0, 1, 1], [], []>} : vector<16x32xbf16>, vector<32x64xbf16>, vector<16x64xf32> -> vector<16x64xf32>
    %36 = tpu.concatenate %35, %35, %35, %35 in 0 : vector<16x64xf32>, vector<16x64xf32>, vector<16x64xf32>, vector<16x64xf32> -> vector<64x64xf32>
    %37 = arith.mulf %36, %3 : vector<64x64xf32>
    %38 = arith.truncf %37 : vector<64x64xf32> to vector<64x64xbf16>
    %c0_28 = arith.constant 0 : index
    %c0_29 = arith.constant 0 : index
    %c0_30 = arith.constant 0 : index
    %39 = vector.load %arg10[%c0_28, %c0_29, %c0_30] : memref<2x32x32xbf16, #tpu.memory_space<vmem>>, vector<1x32x32xbf16>
    %40 = vector.shape_cast %39 : vector<1x32x32xbf16> to vector<32x32xbf16>
    %cst_31 = arith.constant dense<0.000000e+00> : vector<16x64xf32>
    %41 = tpu.matmul %32, %38, %cst_31 {dimension_numbers = #tpu.dot_dimension_numbers<[1], [1], [0], [0], [0, 0, 1, 0], [], []>} : vector<16x64xbf16>, vector<64x64xbf16>, vector<16x64xf32> -> vector<16x64xf32>
    %42 = arith.addf %41, %1 : vector<16x64xf32>
    %43 = math.exp %42 : vector<16x64xf32>
    %44 = arith.truncf %43 : vector<16x64xf32> to vector<16x64xbf16>
    %cst_32 = arith.constant dense<0.000000e+00> : vector<16x64xf32>
    %45 = tpu.matmul %44, %5, %cst_32 {dimension_numbers = #tpu.dot_dimension_numbers<[1], [0], [0], [1], [0, 0, 1, 1], [], []>} : vector<16x64xbf16>, vector<64x64xbf16>, vector<16x64xf32> -> vector<16x64xf32>
    %46 = tpu.reciprocal %45 {approx = true} : vector<16x64xf32> -> vector<16x64xf32>
    %47 = arith.mulf %43, %46 : vector<16x64xf32>
    %48 = arith.truncf %47 : vector<16x64xf32> to vector<16x64xbf16>
    %cst_33 = arith.constant dense<0.000000e+00> : vector<16x64xf32>
    %49 = tpu.matmul %48, %38, %cst_33 {dimension_numbers = #tpu.dot_dimension_numbers<[1], [0], [0], [1], [0, 0, 1, 1], [], []>} : vector<16x64xbf16>, vector<64x64xbf16>, vector<16x64xf32> -> vector<16x64xf32>
    %50 = vector.extract_strided_slice %49 {offsets = [0, 0], sizes = [16, 32], strides = [1, 1]} : vector<16x64xf32> to vector<16x32xf32>
    %51 = arith.truncf %50 : vector<16x32xf32> to vector<16x32xbf16>
    %cst_34 = arith.constant dense<0.000000e+00> : vector<16x32xf32>
    %52 = tpu.matmul %51, %40, %cst_34 {dimension_numbers = #tpu.dot_dimension_numbers<[1], [0], [0], [1], [0, 0, 1, 1], [], []>} : vector<16x32xbf16>, vector<32x32xbf16>, vector<16x32xf32> -> vector<16x32xf32>
    %53 = arith.addf %0, %52 : vector<16x32xf32>
    %cst_35 = arith.constant dense<0.000000e+00> : vector<16xf32>
    %54 = vector.multi_reduction <add>, %53, %cst_35 [1] : vector<16x32xf32> to vector<16xf32>
    %55 = vector.shape_cast %54 : vector<16xf32> to vector<16x1xf32>
    %cst_36 = arith.constant 3.200000e+01 : f32
    %56 = vector.broadcast %cst_36 : f32 to vector<16x1xf32>
    %57 = arith.divf %55, %56 : vector<16x1xf32>
    %58 = arith.mulf %53, %53 : vector<16x32xf32>
    %cst_37 = arith.constant dense<0.000000e+00> : vector<16xf32>
    %59 = vector.multi_reduction <add>, %58, %cst_37 [1] : vector<16x32xf32> to vector<16xf32>
    %60 = vector.shape_cast %59 : vector<16xf32> to vector<16x1xf32>
    %cst_38 = arith.constant 3.200000e+01 : f32
    %61 = vector.broadcast %cst_38 : f32 to vector<16x1xf32>
    %62 = arith.divf %60, %61 : vector<16x1xf32>
    %63 = arith.mulf %57, %57 : vector<16x1xf32>
    %64 = arith.subf %62, %63 : vector<16x1xf32>
    %65 = vector.broadcast %57 : vector<16x1xf32> to vector<16x32xf32>
    %66 = arith.subf %53, %65 : vector<16x32xf32>
    %cst_39 = arith.constant 9.99999974E-6 : f32
    %67 = vector.broadcast %cst_39 : f32 to vector<16x1xf32>
    %68 = arith.addf %64, %67 : vector<16x1xf32>
    %69 = math.rsqrt %68 : vector<16x1xf32>
    %70 = vector.broadcast %69 : vector<16x1xf32> to vector<16x32xf32>
    %71 = arith.mulf %66, %70 : vector<16x32xf32>
    %72 = vector.broadcast %22 : vector<1x32xf32> to vector<16x32xf32>
    %73 = arith.mulf %71, %72 : vector<16x32xf32>
    %74 = vector.broadcast %23 : vector<1x32xf32> to vector<16x32xf32>
    %75 = arith.addf %73, %74 : vector<16x32xf32>
    %76 = arith.truncf %75 : vector<16x32xf32> to vector<16x32xbf16>
    %c0_40 = arith.constant 0 : index
    %c0_41 = arith.constant 0 : index
    %c0_42 = arith.constant 0 : index
    %77 = vector.load %arg11[%c0_40, %c0_41, %c0_42] : memref<2x32x64xbf16, #tpu.memory_space<vmem>>, vector<1x32x64xbf16>
    %78 = vector.shape_cast %77 : vector<1x32x64xbf16> to vector<32x64xbf16>
    %cst_43 = arith.constant dense<0.000000e+00> : vector<16x64xf32>
    %79 = tpu.matmul %76, %78, %cst_43 {dimension_numbers = #tpu.dot_dimension_numbers<[1], [0], [0], [1], [0, 0, 1, 1], [], []>} : vector<16x32xbf16>, vector<32x64xbf16>, vector<16x64xf32> -> vector<16x64xf32>
    %80 = arith.truncf %79 : vector<16x64xf32> to vector<16x64xbf16>
    %c0_44 = arith.constant 0 : index
    %c0_45 = arith.constant 0 : index
    %c0_46 = arith.constant 0 : index
    %81 = vector.load %arg13[%c0_44, %c0_45, %c0_46] : memref<2x32x32xbf16, #tpu.memory_space<vmem>>, vector<1x32x32xbf16>
    %82 = vector.shape_cast %81 : vector<1x32x32xbf16> to vector<32x32xbf16>
    %cst_47 = arith.constant dense<0.000000e+00> : vector<16x64xf32>
    %83 = tpu.matmul %80, %14, %cst_47 {dimension_numbers = #tpu.dot_dimension_numbers<[1], [1], [0], [0], [0, 0, 1, 0], [], []>} : vector<16x64xbf16>, vector<64x64xbf16>, vector<16x64xf32> -> vector<16x64xf32>
    %84 = arith.addf %83, %2 : vector<16x64xf32>
    %85 = math.exp %84 : vector<16x64xf32>
    %86 = arith.truncf %85 : vector<16x64xf32> to vector<16x64xbf16>
    %cst_48 = arith.constant dense<0.000000e+00> : vector<16x64xf32>
    %87 = tpu.matmul %86, %6, %cst_48 {dimension_numbers = #tpu.dot_dimension_numbers<[1], [0], [0], [1], [0, 0, 1, 1], [], []>} : vector<16x64xbf16>, vector<64x64xbf16>, vector<16x64xf32> -> vector<16x64xf32>
    %88 = tpu.reciprocal %87 {approx = true} : vector<16x64xf32> -> vector<16x64xf32>
    %89 = arith.mulf %85, %88 : vector<16x64xf32>
    %90 = arith.truncf %89 : vector<16x64xf32> to vector<16x64xbf16>
    %cst_49 = arith.constant dense<0.000000e+00> : vector<16x64xf32>
    %91 = tpu.matmul %90, %14, %cst_49 {dimension_numbers = #tpu.dot_dimension_numbers<[1], [0], [0], [1], [0, 0, 1, 1], [], []>} : vector<16x64xbf16>, vector<64x64xbf16>, vector<16x64xf32> -> vector<16x64xf32>
    %92 = vector.extract_strided_slice %91 {offsets = [0, 0], sizes = [16, 32], strides = [1, 1]} : vector<16x64xf32> to vector<16x32xf32>
    %93 = arith.truncf %92 : vector<16x32xf32> to vector<16x32xbf16>
    %cst_50 = arith.constant dense<0.000000e+00> : vector<16x32xf32>
    %94 = tpu.matmul %93, %82, %cst_50 {dimension_numbers = #tpu.dot_dimension_numbers<[1], [0], [0], [1], [0, 0, 1, 1], [], []>} : vector<16x32xbf16>, vector<32x32xbf16>, vector<16x32xf32> -> vector<16x32xf32>
    %95 = arith.addf %75, %94 : vector<16x32xf32>
    %cst_51 = arith.constant dense<0.000000e+00> : vector<16xf32>
    %96 = vector.multi_reduction <add>, %95, %cst_51 [1] : vector<16x32xf32> to vector<16xf32>
    %97 = vector.shape_cast %96 : vector<16xf32> to vector<16x1xf32>
    %cst_52 = arith.constant 3.200000e+01 : f32
    %98 = vector.broadcast %cst_52 : f32 to vector<16x1xf32>
    %99 = arith.divf %97, %98 : vector<16x1xf32>
    %100 = arith.mulf %95, %95 : vector<16x32xf32>
    %cst_53 = arith.constant dense<0.000000e+00> : vector<16xf32>
    %101 = vector.multi_reduction <add>, %100, %cst_53 [1] : vector<16x32xf32> to vector<16xf32>
    %102 = vector.shape_cast %101 : vector<16xf32> to vector<16x1xf32>
    %cst_54 = arith.constant 3.200000e+01 : f32
    %103 = vector.broadcast %cst_54 : f32 to vector<16x1xf32>
    %104 = arith.divf %102, %103 : vector<16x1xf32>
    %105 = arith.mulf %99, %99 : vector<16x1xf32>
    %106 = arith.subf %104, %105 : vector<16x1xf32>
    %107 = vector.broadcast %99 : vector<16x1xf32> to vector<16x32xf32>
    %108 = arith.subf %95, %107 : vector<16x32xf32>
    %cst_55 = arith.constant 9.99999974E-6 : f32
    %109 = vector.broadcast %cst_55 : f32 to vector<16x1xf32>
    %110 = arith.addf %106, %109 : vector<16x1xf32>
    %111 = math.rsqrt %110 : vector<16x1xf32>
    %112 = vector.broadcast %111 : vector<16x1xf32> to vector<16x32xf32>
    %113 = arith.mulf %108, %112 : vector<16x32xf32>
    %114 = vector.broadcast %24 : vector<1x32xf32> to vector<16x32xf32>
    %115 = arith.mulf %113, %114 : vector<16x32xf32>
    %116 = vector.broadcast %25 : vector<1x32xf32> to vector<16x32xf32>
    %117 = arith.addf %115, %116 : vector<16x32xf32>
    %118 = arith.truncf %117 : vector<16x32xf32> to vector<16x32xbf16>
    %c0_56 = arith.constant 0 : index
    %c0_57 = arith.constant 0 : index
    %c0_58 = arith.constant 0 : index
    %119 = vector.load %arg14[%c0_56, %c0_57, %c0_58] : memref<2x32x64xbf16, #tpu.memory_space<vmem>>, vector<1x32x64xbf16>
    %120 = vector.shape_cast %119 : vector<1x32x64xbf16> to vector<32x64xbf16>
    %cst_59 = arith.constant dense<0.000000e+00> : vector<16x64xf32>
    %121 = tpu.matmul %118, %120, %cst_59 {dimension_numbers = #tpu.dot_dimension_numbers<[1], [0], [0], [1], [0, 0, 1, 1], [], []>} : vector<16x32xbf16>, vector<32x64xbf16>, vector<16x64xf32> -> vector<16x64xf32>
    %122 = vector.broadcast %20 : vector<1x64xf32> to vector<16x64xf32>
    %123 = arith.addf %121, %122 : vector<16x64xf32>
    %cst_60 = arith.constant 0.000000e+00 : f32
    %124 = vector.broadcast %cst_60 : f32 to vector<16x64xf32>
    %125 = arith.maximumf %123, %124 : vector<16x64xf32>
    %126 = arith.truncf %125 : vector<16x64xf32> to vector<16x64xbf16>
    %c0_61 = arith.constant 0 : index
    %c0_62 = arith.constant 0 : index
    %c0_63 = arith.constant 0 : index
    %127 = vector.load %arg15[%c0_61, %c0_62, %c0_63] : memref<2x64x32xbf16, #tpu.memory_space<vmem>>, vector<1x64x32xbf16>
    %128 = vector.shape_cast %127 : vector<1x64x32xbf16> to vector<64x32xbf16>
    %cst_64 = arith.constant dense<0.000000e+00> : vector<16x32xf32>
    %129 = tpu.matmul %126, %128, %cst_64 {dimension_numbers = #tpu.dot_dimension_numbers<[1], [0], [0], [1], [0, 0, 1, 1], [], []>} : vector<16x64xbf16>, vector<64x32xbf16>, vector<16x32xf32> -> vector<16x32xf32>
    %130 = vector.broadcast %21 : vector<1x32xf32> to vector<16x32xf32>
    %131 = arith.addf %129, %130 : vector<16x32xf32>
    %132 = arith.addf %117, %131 : vector<16x32xf32>
    %cst_65 = arith.constant dense<0.000000e+00> : vector<16xf32>
    %133 = vector.multi_reduction <add>, %132, %cst_65 [1] : vector<16x32xf32> to vector<16xf32>
    %134 = vector.shape_cast %133 : vector<16xf32> to vector<16x1xf32>
    %cst_66 = arith.constant 3.200000e+01 : f32
    %135 = vector.broadcast %cst_66 : f32 to vector<16x1xf32>
    %136 = arith.divf %134, %135 : vector<16x1xf32>
    %137 = arith.mulf %132, %132 : vector<16x32xf32>
    %cst_67 = arith.constant dense<0.000000e+00> : vector<16xf32>
    %138 = vector.multi_reduction <add>, %137, %cst_67 [1] : vector<16x32xf32> to vector<16xf32>
    %139 = vector.shape_cast %138 : vector<16xf32> to vector<16x1xf32>
    %cst_68 = arith.constant 3.200000e+01 : f32
    %140 = vector.broadcast %cst_68 : f32 to vector<16x1xf32>
    %141 = arith.divf %139, %140 : vector<16x1xf32>
    %142 = arith.mulf %136, %136 : vector<16x1xf32>
    %143 = arith.subf %141, %142 : vector<16x1xf32>
    %144 = vector.broadcast %136 : vector<16x1xf32> to vector<16x32xf32>
    %145 = arith.subf %132, %144 : vector<16x32xf32>
    %cst_69 = arith.constant 9.99999974E-6 : f32
    %146 = vector.broadcast %cst_69 : f32 to vector<16x1xf32>
    %147 = arith.addf %143, %146 : vector<16x1xf32>
    %148 = math.rsqrt %147 : vector<16x1xf32>
    %149 = vector.broadcast %148 : vector<16x1xf32> to vector<16x32xf32>
    %150 = arith.mulf %145, %149 : vector<16x32xf32>
    %151 = vector.broadcast %26 : vector<1x32xf32> to vector<16x32xf32>
    %152 = arith.mulf %150, %151 : vector<16x32xf32>
    %153 = vector.broadcast %27 : vector<1x32xf32> to vector<16x32xf32>
    %154 = arith.addf %152, %153 : vector<16x32xf32>
    %c1 = arith.constant 1 : index
    %c0_70 = arith.constant 0 : index
    %c0_71 = arith.constant 0 : index
    %155 = vector.load %arg16[%c1, %c0_70, %c0_71] : memref<2x8x64xf32, #tpu.memory_space<vmem>>, vector<1x8x64xf32>
    %156 = vector.shape_cast %155 : vector<1x8x64xf32> to vector<8x64xf32>
    %157 = vector.extract_strided_slice %156 {offsets = [0, 0], sizes = [1, 64], strides = [1, 1]} : vector<8x64xf32> to vector<1x64xf32>
    %158 = vector.extract_strided_slice %156 {offsets = [1, 0], sizes = [1, 32], strides = [1, 1]} : vector<8x64xf32> to vector<1x32xf32>
    %159 = vector.extract_strided_slice %156 {offsets = [2, 0], sizes = [1, 32], strides = [1, 1]} : vector<8x64xf32> to vector<1x32xf32>
    %160 = vector.extract_strided_slice %156 {offsets = [3, 0], sizes = [1, 32], strides = [1, 1]} : vector<8x64xf32> to vector<1x32xf32>
    %161 = vector.extract_strided_slice %156 {offsets = [4, 0], sizes = [1, 32], strides = [1, 1]} : vector<8x64xf32> to vector<1x32xf32>
    %162 = vector.extract_strided_slice %156 {offsets = [5, 0], sizes = [1, 32], strides = [1, 1]} : vector<8x64xf32> to vector<1x32xf32>
    %163 = vector.extract_strided_slice %156 {offsets = [6, 0], sizes = [1, 32], strides = [1, 1]} : vector<8x64xf32> to vector<1x32xf32>
    %164 = vector.extract_strided_slice %156 {offsets = [7, 0], sizes = [1, 32], strides = [1, 1]} : vector<8x64xf32> to vector<1x32xf32>
    %165 = arith.truncf %154 : vector<16x32xf32> to vector<16x32xbf16>
    %c1_72 = arith.constant 1 : index
    %c0_73 = arith.constant 0 : index
    %c0_74 = arith.constant 0 : index
    %166 = vector.load %arg8[%c1_72, %c0_73, %c0_74] : memref<2x32x64xbf16, #tpu.memory_space<vmem>>, vector<1x32x64xbf16>
    %167 = vector.shape_cast %166 : vector<1x32x64xbf16> to vector<32x64xbf16>
    %cst_75 = arith.constant dense<0.000000e+00> : vector<16x64xf32>
    %168 = tpu.matmul %165, %167, %cst_75 {dimension_numbers = #tpu.dot_dimension_numbers<[1], [0], [0], [1], [0, 0, 1, 1], [], []>} : vector<16x32xbf16>, vector<32x64xbf16>, vector<16x64xf32> -> vector<16x64xf32>
    %169 = arith.truncf %168 : vector<16x64xf32> to vector<16x64xbf16>
    %c1_76 = arith.constant 1 : index
    %c0_77 = arith.constant 0 : index
    %c0_78 = arith.constant 0 : index
    %170 = vector.load %arg9[%c1_76, %c0_77, %c0_78] : memref<2x32x64xbf16, #tpu.memory_space<vmem>>, vector<1x32x64xbf16>
    %171 = vector.shape_cast %170 : vector<1x32x64xbf16> to vector<32x64xbf16>
    %cst_79 = arith.constant dense<0.000000e+00> : vector<16x64xf32>
    %172 = tpu.matmul %165, %171, %cst_79 {dimension_numbers = #tpu.dot_dimension_numbers<[1], [0], [0], [1], [0, 0, 1, 1], [], []>} : vector<16x32xbf16>, vector<32x64xbf16>, vector<16x64xf32> -> vector<16x64xf32>
    %173 = tpu.concatenate %172, %172, %172, %172 in 0 : vector<16x64xf32>, vector<16x64xf32>, vector<16x64xf32>, vector<16x64xf32> -> vector<64x64xf32>
    %174 = arith.mulf %173, %3 : vector<64x64xf32>
    %175 = arith.truncf %174 : vector<64x64xf32> to vector<64x64xbf16>
    %c1_80 = arith.constant 1 : index
    %c0_81 = arith.constant 0 : index
    %c0_82 = arith.constant 0 : index
    %176 = vector.load %arg10[%c1_80, %c0_81, %c0_82] : memref<2x32x32xbf16, #tpu.memory_space<vmem>>, vector<1x32x32xbf16>
    %177 = vector.shape_cast %176 : vector<1x32x32xbf16> to vector<32x32xbf16>
    %cst_83 = arith.constant dense<0.000000e+00> : vector<16x64xf32>
    %178 = tpu.matmul %169, %175, %cst_83 {dimension_numbers = #tpu.dot_dimension_numbers<[1], [1], [0], [0], [0, 0, 1, 0], [], []>} : vector<16x64xbf16>, vector<64x64xbf16>, vector<16x64xf32> -> vector<16x64xf32>
    %179 = arith.addf %178, %1 : vector<16x64xf32>
    %180 = math.exp %179 : vector<16x64xf32>
    %181 = arith.truncf %180 : vector<16x64xf32> to vector<16x64xbf16>
    %cst_84 = arith.constant dense<0.000000e+00> : vector<16x64xf32>
    %182 = tpu.matmul %181, %5, %cst_84 {dimension_numbers = #tpu.dot_dimension_numbers<[1], [0], [0], [1], [0, 0, 1, 1], [], []>} : vector<16x64xbf16>, vector<64x64xbf16>, vector<16x64xf32> -> vector<16x64xf32>
    %183 = tpu.reciprocal %182 {approx = true} : vector<16x64xf32> -> vector<16x64xf32>
    %184 = arith.mulf %180, %183 : vector<16x64xf32>
    %185 = arith.truncf %184 : vector<16x64xf32> to vector<16x64xbf16>
    %cst_85 = arith.constant dense<0.000000e+00> : vector<16x64xf32>
    %186 = tpu.matmul %185, %175, %cst_85 {dimension_numbers = #tpu.dot_dimension_numbers<[1], [0], [0], [1], [0, 0, 1, 1], [], []>} : vector<16x64xbf16>, vector<64x64xbf16>, vector<16x64xf32> -> vector<16x64xf32>
    %187 = vector.extract_strided_slice %186 {offsets = [0, 0], sizes = [16, 32], strides = [1, 1]} : vector<16x64xf32> to vector<16x32xf32>
    %188 = arith.truncf %187 : vector<16x32xf32> to vector<16x32xbf16>
    %cst_86 = arith.constant dense<0.000000e+00> : vector<16x32xf32>
    %189 = tpu.matmul %188, %177, %cst_86 {dimension_numbers = #tpu.dot_dimension_numbers<[1], [0], [0], [1], [0, 0, 1, 1], [], []>} : vector<16x32xbf16>, vector<32x32xbf16>, vector<16x32xf32> -> vector<16x32xf32>
    %190 = arith.addf %154, %189 : vector<16x32xf32>
    %cst_87 = arith.constant dense<0.000000e+00> : vector<16xf32>
    %191 = vector.multi_reduction <add>, %190, %cst_87 [1] : vector<16x32xf32> to vector<16xf32>
    %192 = vector.shape_cast %191 : vector<16xf32> to vector<16x1xf32>
    %cst_88 = arith.constant 3.200000e+01 : f32
    %193 = vector.broadcast %cst_88 : f32 to vector<16x1xf32>
    %194 = arith.divf %192, %193 : vector<16x1xf32>
    %195 = arith.mulf %190, %190 : vector<16x32xf32>
    %cst_89 = arith.constant dense<0.000000e+00> : vector<16xf32>
    %196 = vector.multi_reduction <add>, %195, %cst_89 [1] : vector<16x32xf32> to vector<16xf32>
    %197 = vector.shape_cast %196 : vector<16xf32> to vector<16x1xf32>
    %cst_90 = arith.constant 3.200000e+01 : f32
    %198 = vector.broadcast %cst_90 : f32 to vector<16x1xf32>
    %199 = arith.divf %197, %198 : vector<16x1xf32>
    %200 = arith.mulf %194, %194 : vector<16x1xf32>
    %201 = arith.subf %199, %200 : vector<16x1xf32>
    %202 = vector.broadcast %194 : vector<16x1xf32> to vector<16x32xf32>
    %203 = arith.subf %190, %202 : vector<16x32xf32>
    %cst_91 = arith.constant 9.99999974E-6 : f32
    %204 = vector.broadcast %cst_91 : f32 to vector<16x1xf32>
    %205 = arith.addf %201, %204 : vector<16x1xf32>
    %206 = math.rsqrt %205 : vector<16x1xf32>
    %207 = vector.broadcast %206 : vector<16x1xf32> to vector<16x32xf32>
    %208 = arith.mulf %203, %207 : vector<16x32xf32>
    %209 = vector.broadcast %159 : vector<1x32xf32> to vector<16x32xf32>
    %210 = arith.mulf %208, %209 : vector<16x32xf32>
    %211 = vector.broadcast %160 : vector<1x32xf32> to vector<16x32xf32>
    %212 = arith.addf %210, %211 : vector<16x32xf32>
    %213 = arith.truncf %212 : vector<16x32xf32> to vector<16x32xbf16>
    %c1_92 = arith.constant 1 : index
    %c0_93 = arith.constant 0 : index
    %c0_94 = arith.constant 0 : index
    %214 = vector.load %arg11[%c1_92, %c0_93, %c0_94] : memref<2x32x64xbf16, #tpu.memory_space<vmem>>, vector<1x32x64xbf16>
    %215 = vector.shape_cast %214 : vector<1x32x64xbf16> to vector<32x64xbf16>
    %cst_95 = arith.constant dense<0.000000e+00> : vector<16x64xf32>
    %216 = tpu.matmul %213, %215, %cst_95 {dimension_numbers = #tpu.dot_dimension_numbers<[1], [0], [0], [1], [0, 0, 1, 1], [], []>} : vector<16x32xbf16>, vector<32x64xbf16>, vector<16x64xf32> -> vector<16x64xf32>
    %217 = arith.truncf %216 : vector<16x64xf32> to vector<16x64xbf16>
    %c1_96 = arith.constant 1 : index
    %c0_97 = arith.constant 0 : index
    %c0_98 = arith.constant 0 : index
    %218 = vector.load %arg13[%c1_96, %c0_97, %c0_98] : memref<2x32x32xbf16, #tpu.memory_space<vmem>>, vector<1x32x32xbf16>
    %219 = vector.shape_cast %218 : vector<1x32x32xbf16> to vector<32x32xbf16>
    %cst_99 = arith.constant dense<0.000000e+00> : vector<16x64xf32>
    %220 = tpu.matmul %217, %17, %cst_99 {dimension_numbers = #tpu.dot_dimension_numbers<[1], [1], [0], [0], [0, 0, 1, 0], [], []>} : vector<16x64xbf16>, vector<64x64xbf16>, vector<16x64xf32> -> vector<16x64xf32>
    %221 = arith.addf %220, %2 : vector<16x64xf32>
    %222 = math.exp %221 : vector<16x64xf32>
    %223 = arith.truncf %222 : vector<16x64xf32> to vector<16x64xbf16>
    %cst_100 = arith.constant dense<0.000000e+00> : vector<16x64xf32>
    %224 = tpu.matmul %223, %6, %cst_100 {dimension_numbers = #tpu.dot_dimension_numbers<[1], [0], [0], [1], [0, 0, 1, 1], [], []>} : vector<16x64xbf16>, vector<64x64xbf16>, vector<16x64xf32> -> vector<16x64xf32>
    %225 = tpu.reciprocal %224 {approx = true} : vector<16x64xf32> -> vector<16x64xf32>
    %226 = arith.mulf %222, %225 : vector<16x64xf32>
    %227 = arith.truncf %226 : vector<16x64xf32> to vector<16x64xbf16>
    %cst_101 = arith.constant dense<0.000000e+00> : vector<16x64xf32>
    %228 = tpu.matmul %227, %17, %cst_101 {dimension_numbers = #tpu.dot_dimension_numbers<[1], [0], [0], [1], [0, 0, 1, 1], [], []>} : vector<16x64xbf16>, vector<64x64xbf16>, vector<16x64xf32> -> vector<16x64xf32>
    %229 = vector.extract_strided_slice %228 {offsets = [0, 0], sizes = [16, 32], strides = [1, 1]} : vector<16x64xf32> to vector<16x32xf32>
    %230 = arith.truncf %229 : vector<16x32xf32> to vector<16x32xbf16>
    %cst_102 = arith.constant dense<0.000000e+00> : vector<16x32xf32>
    %231 = tpu.matmul %230, %219, %cst_102 {dimension_numbers = #tpu.dot_dimension_numbers<[1], [0], [0], [1], [0, 0, 1, 1], [], []>} : vector<16x32xbf16>, vector<32x32xbf16>, vector<16x32xf32> -> vector<16x32xf32>
    %232 = arith.addf %212, %231 : vector<16x32xf32>
    %cst_103 = arith.constant dense<0.000000e+00> : vector<16xf32>
    %233 = vector.multi_reduction <add>, %232, %cst_103 [1] : vector<16x32xf32> to vector<16xf32>
    %234 = vector.shape_cast %233 : vector<16xf32> to vector<16x1xf32>
    %cst_104 = arith.constant 3.200000e+01 : f32
    %235 = vector.broadcast %cst_104 : f32 to vector<16x1xf32>
    %236 = arith.divf %234, %235 : vector<16x1xf32>
    %237 = arith.mulf %232, %232 : vector<16x32xf32>
    %cst_105 = arith.constant dense<0.000000e+00> : vector<16xf32>
    %238 = vector.multi_reduction <add>, %237, %cst_105 [1] : vector<16x32xf32> to vector<16xf32>
    %239 = vector.shape_cast %238 : vector<16xf32> to vector<16x1xf32>
    %cst_106 = arith.constant 3.200000e+01 : f32
    %240 = vector.broadcast %cst_106 : f32 to vector<16x1xf32>
    %241 = arith.divf %239, %240 : vector<16x1xf32>
    %242 = arith.mulf %236, %236 : vector<16x1xf32>
    %243 = arith.subf %241, %242 : vector<16x1xf32>
    %244 = vector.broadcast %236 : vector<16x1xf32> to vector<16x32xf32>
    %245 = arith.subf %232, %244 : vector<16x32xf32>
    %cst_107 = arith.constant 9.99999974E-6 : f32
    %246 = vector.broadcast %cst_107 : f32 to vector<16x1xf32>
    %247 = arith.addf %243, %246 : vector<16x1xf32>
    %248 = math.rsqrt %247 : vector<16x1xf32>
    %249 = vector.broadcast %248 : vector<16x1xf32> to vector<16x32xf32>
    %250 = arith.mulf %245, %249 : vector<16x32xf32>
    %251 = vector.broadcast %161 : vector<1x32xf32> to vector<16x32xf32>
    %252 = arith.mulf %250, %251 : vector<16x32xf32>
    %253 = vector.broadcast %162 : vector<1x32xf32> to vector<16x32xf32>
    %254 = arith.addf %252, %253 : vector<16x32xf32>
    %255 = arith.truncf %254 : vector<16x32xf32> to vector<16x32xbf16>
    %c1_108 = arith.constant 1 : index
    %c0_109 = arith.constant 0 : index
    %c0_110 = arith.constant 0 : index
    %256 = vector.load %arg14[%c1_108, %c0_109, %c0_110] : memref<2x32x64xbf16, #tpu.memory_space<vmem>>, vector<1x32x64xbf16>
    %257 = vector.shape_cast %256 : vector<1x32x64xbf16> to vector<32x64xbf16>
    %cst_111 = arith.constant dense<0.000000e+00> : vector<16x64xf32>
    %258 = tpu.matmul %255, %257, %cst_111 {dimension_numbers = #tpu.dot_dimension_numbers<[1], [0], [0], [1], [0, 0, 1, 1], [], []>} : vector<16x32xbf16>, vector<32x64xbf16>, vector<16x64xf32> -> vector<16x64xf32>
    %259 = vector.broadcast %157 : vector<1x64xf32> to vector<16x64xf32>
    %260 = arith.addf %258, %259 : vector<16x64xf32>
    %cst_112 = arith.constant 0.000000e+00 : f32
    %261 = vector.broadcast %cst_112 : f32 to vector<16x64xf32>
    %262 = arith.maximumf %260, %261 : vector<16x64xf32>
    %263 = arith.truncf %262 : vector<16x64xf32> to vector<16x64xbf16>
    %c1_113 = arith.constant 1 : index
    %c0_114 = arith.constant 0 : index
    %c0_115 = arith.constant 0 : index
    %264 = vector.load %arg15[%c1_113, %c0_114, %c0_115] : memref<2x64x32xbf16, #tpu.memory_space<vmem>>, vector<1x64x32xbf16>
    %265 = vector.shape_cast %264 : vector<1x64x32xbf16> to vector<64x32xbf16>
    %cst_116 = arith.constant dense<0.000000e+00> : vector<16x32xf32>
    %266 = tpu.matmul %263, %265, %cst_116 {dimension_numbers = #tpu.dot_dimension_numbers<[1], [0], [0], [1], [0, 0, 1, 1], [], []>} : vector<16x64xbf16>, vector<64x32xbf16>, vector<16x32xf32> -> vector<16x32xf32>
    %267 = vector.broadcast %158 : vector<1x32xf32> to vector<16x32xf32>
    %268 = arith.addf %266, %267 : vector<16x32xf32>
    %269 = arith.addf %254, %268 : vector<16x32xf32>
    %cst_117 = arith.constant dense<0.000000e+00> : vector<16xf32>
    %270 = vector.multi_reduction <add>, %269, %cst_117 [1] : vector<16x32xf32> to vector<16xf32>
    %271 = vector.shape_cast %270 : vector<16xf32> to vector<16x1xf32>
    %cst_118 = arith.constant 3.200000e+01 : f32
    %272 = vector.broadcast %cst_118 : f32 to vector<16x1xf32>
    %273 = arith.divf %271, %272 : vector<16x1xf32>
    %274 = arith.mulf %269, %269 : vector<16x32xf32>
    %cst_119 = arith.constant dense<0.000000e+00> : vector<16xf32>
    %275 = vector.multi_reduction <add>, %274, %cst_119 [1] : vector<16x32xf32> to vector<16xf32>
    %276 = vector.shape_cast %275 : vector<16xf32> to vector<16x1xf32>
    %cst_120 = arith.constant 3.200000e+01 : f32
    %277 = vector.broadcast %cst_120 : f32 to vector<16x1xf32>
    %278 = arith.divf %276, %277 : vector<16x1xf32>
    %279 = arith.mulf %273, %273 : vector<16x1xf32>
    %280 = arith.subf %278, %279 : vector<16x1xf32>
    %281 = vector.broadcast %273 : vector<16x1xf32> to vector<16x32xf32>
    %282 = arith.subf %269, %281 : vector<16x32xf32>
    %cst_121 = arith.constant 9.99999974E-6 : f32
    %283 = vector.broadcast %cst_121 : f32 to vector<16x1xf32>
    %284 = arith.addf %280, %283 : vector<16x1xf32>
    %285 = math.rsqrt %284 : vector<16x1xf32>
    %286 = vector.broadcast %285 : vector<16x1xf32> to vector<16x32xf32>
    %287 = arith.mulf %282, %286 : vector<16x32xf32>
    %288 = vector.broadcast %163 : vector<1x32xf32> to vector<16x32xf32>
    %289 = arith.mulf %287, %288 : vector<16x32xf32>
    %290 = vector.broadcast %164 : vector<1x32xf32> to vector<16x32xf32>
    %291 = arith.addf %289, %290 : vector<16x32xf32>
    %c0_122 = arith.constant 0 : index
    %c0_123 = arith.constant 0 : index
    %292 = vector.load %arg17[%c0_122, %c0_123] : memref<16x32xf32, #tpu.memory_space<vmem>>, vector<16x32xf32>
    tpu.vector_store %arg17[%c0_122, %c0_123], %291 {strides = array<i32>} : memref<16x32xf32, #tpu.memory_space<vmem>>, vector<16x32xf32>,
    return
  }
}

</mosaic_0001>

<llo_original>
// kernel: decoder_forward.1
$region0: #{decoder_forward.1}
  #allocation0 [shape = 'u32[]', space=smem, size = 0x4, offset = 0x4, fixed_abs, tag = 'smem constant byte address 0x4 - core index']
  #allocation1 [shape = 'u32[144,128]{1,0:T(1,128)}', space=vmem, size = 0x12000, scoped, tag = 'internal scratch']
  %s0 = inlined_call_operand.hbm [shape: f32[16,32], index: 0, kind: input, shape index: {}]
  %s1 = inlined_call_operand.hbm [shape: f32[16,32], index: 1, kind: input, shape index: {}]
  %s2 = inlined_call_operand.hbm [shape: f32[16,64], index: 2, kind: input, shape index: {}]
  %s3 = inlined_call_operand.hbm [shape: f32[16,64], index: 3, kind: input, shape index: {}]
  %s4 = inlined_call_operand.vmem [shape: f32[64,64], index: 4, kind: input, shape index: {}]
  %s5 = inlined_call_operand.vmem [shape: bf16[64,64], index: 5, kind: input, shape index: {}]
  %s6 = inlined_call_operand.hbm [shape: f32[64,64], index: 6, kind: input, shape index: {}]
  %s7 = inlined_call_operand.hbm [shape: bf16[64,64], index: 7, kind: input, shape index: {}]
  %s8 = inlined_call_operand.hbm [shape: bf16[2,32,64], index: 8, kind: input, shape index: {}]
  %s9 = inlined_call_operand.hbm [shape: bf16[2,32,64], index: 9, kind: input, shape index: {}]
  %s10 = inlined_call_operand.hbm [shape: bf16[2,32,32], index: 10, kind: input, shape index: {}]
  %s11 = inlined_call_operand.hbm [shape: bf16[2,32,64], index: 11, kind: input, shape index: {}]
  %s12 = inlined_call_operand.hbm [shape: bf16[32,256], index: 12, kind: input, shape index: {}]
  %s13 = inlined_call_operand.hbm [shape: bf16[2,32,32], index: 13, kind: input, shape index: {}]
  %s14 = inlined_call_operand.hbm [shape: bf16[2,32,64], index: 14, kind: input, shape index: {}]
  %s15 = inlined_call_operand.vmem [shape: bf16[2,64,32], index: 15, kind: input, shape index: {}]
  %s16 = inlined_call_operand.vmem [shape: f32[2,8,64], index: 16, kind: input, shape index: {}]
  %s17 = inlined_call_operand.hbm [shape: f32[16,32], index: 17, kind: output, shape index: {}]
  %s18 = sld [smem:[#allocation0]]
  $region130: #{decoder_forward.1} parent=0
    _
  %s20 = ssub.s32 1, %s18
  %s21 = scalar_select 0, %s20, %s18
  $region1: #{decoder_forward.1} parent=0
    #allocation2 [shape = 'u8[8192]{0}', space=vmem, size = 0x2000, scoped, tag = 'input window, operand 0, single buffered']
    #allocation3 [shape = 's32[1]{0}', space=sflag, size = 0x4, scoped, tag = 'scoped memory for decoder_forward.1']
    #allocation4 [shape = 's32[1]{0}', space=sflag, size = 0x4, scoped, tag = 'scoped memory for decoder_forward.1']
    #allocation5 [shape = 'u8[8192]{0}', space=vmem, size = 0x2000, scoped, tag = 'input window, operand 1, single buffered']
    #allocation6 [shape = 's32[1]{0}', space=sflag, size = 0x4, scoped, tag = 'scoped memory for decoder_forward.1']
    #allocation7 [shape = 'u8[8192]{0}', space=vmem, size = 0x2000, scoped, tag = 'input window, operand 2, single buffered']
    #allocation8 [shape = 'u8[8192]{0}', space=vmem, size = 0x2000, scoped, tag = 'input window, operand 3, single buffered']
    #allocation9 [shape = 's32[1]{0}', space=sflag, size = 0x4, scoped, tag = 'scoped memory for decoder_forward.1']
    #allocation10 [shape = 'u8[32768]{0}', space=vmem, size = 0x8000, scoped, tag = 'input window, operand 6, single buffered']
    #allocation11 [shape = 'u8[16384]{0}', space=vmem, size = 0x4000, scoped, tag = 'input window, operand 7, single buffered']
    #allocation12 [shape = 's32[1]{0}', space=sflag, size = 0x4, scoped, tag = 'scoped memory for decoder_forward.1']
    #allocation13 [shape = 'u8[16384]{0}', space=vmem, size = 0x4000, scoped, tag = 'input window, operand 8, single buffered']
    #allocation14 [shape = 'u8[16384]{0}', space=vmem, size = 0x4000, scoped, tag = 'input window, operand 9, single buffered']
    #allocation15 [shape = 's32[1]{0}', space=sflag, size = 0x4, scoped, tag = 'scoped memory for decoder_forward.1']
    #allocation16 [shape = 'u8[16384]{0}', space=vmem, size = 0x4000, scoped, tag = 'input window, operand 10, single buffered']
    #allocation17 [shape = 'u8[16384]{0}', space=vmem, size = 0x4000, scoped, tag = 'input window, operand 11, single buffered']
    #allocation18 [shape = 's32[1]{0}', space=sflag, size = 0x4, scoped, tag = 'scoped memory for decoder_forward.1']
    #allocation19 [shape = 'u8[16384]{0}', space=vmem, size = 0x4000, scoped, tag = 'input window, operand 12, single buffered']
    #allocation20 [shape = 'u8[16384]{0}', space=vmem, size = 0x4000, scoped, tag = 'input window, operand 13, single buffered']
    #allocation21 [shape = 's32[1]{0}', space=sflag, size = 0x4, scoped, tag = 'scoped memory for decoder_forward.1']
    #allocation22 [shape = 'u8[16384]{0}', space=vmem, size = 0x4000, scoped, tag = 'input window, operand 14, single buffered']
    #allocation23 [shape = 'u8[8192]{0}', space=vmem, size = 0x2000, scoped, tag = 'output window, operand 0, single buffered']
    %22 = vsyncpa [#allocation3], 0
    %23 = vsyncpa [#allocation6], 0
    %24 = vsyncpa [#allocation9], 0
    %25 = vsyncpa [#allocation12], 0
    %26 = vsyncpa [#allocation15], 0
    %27 = vsyncpa [#allocation18], 0
    %28 = vsyncpa [#allocation21], 0
    %29 = vsyncpa [#allocation4], 0
    // Predicated region
    $region2: #{decoder_forward.1} parent=1 // pred_check
      _
    $region3: #{decoder_forward.1} parent=1 // pred_check_branch
      %31 = sbr.rel (0) target = $region5
    $region4: #{decoder_forward.1} parent=1 // pred_region
      %s33 = ssub.s32 256, 256
      %34 = vsyncadd [#allocation3], %s33
      %s35 = sshll.u32 [#allocation2], 4
      %s36 = int_to_ptr.vmem [resolvable:$true] %s35
      %41 = dma.hbm_to_vmem [thread:$0]  %s0, 256, %s36, [#allocation3], 128, 128, 8
    $region5: #{decoder_forward.1} parent=1 // pred_fallthru
      _
    // Predicated region
    $region6: #{decoder_forward.1} parent=1 // pred_check
      _
    $region7: #{decoder_forward.1} parent=1 // pred_check_branch
      %43 = sbr.rel (0) target = $region9
    $region8: #{decoder_forward.1} parent=1 // pred_region
      %s45 = ssub.s32 256, 256
      %46 = vsyncadd [#allocation6], %s45
      %s47 = sshll.u32 [#allocation5], 4
      %s48 = int_to_ptr.vmem [resolvable:$true] %s47
      %53 = dma.hbm_to_vmem [thread:$0]  %s1, 256, %s48, [#allocation6], 128, 128, 8
    $region9: #{decoder_forward.1} parent=1 // pred_fallthru
      _
    // Predicated region
    $region10: #{decoder_forward.1} parent=1 // pred_check
      _
    $region11: #{decoder_forward.1} parent=1 // pred_check_branch
      %55 = sbr.rel (0) target = $region13
    $region12: #{decoder_forward.1} parent=1 // pred_region
      %s57 = ssub.s32 256, 256
      %58 = vsyncadd [#allocation6], %s57
      %s59 = sshll.u32 [#allocation7], 4
      %s60 = int_to_ptr.vmem [resolvable:$true] %s59
      %65 = dma.hbm_to_vmem [thread:$0]  %s2, 256, %s60, [#allocation6], 128, 128, 8
    $region13: #{decoder_forward.1} parent=1 // pred_fallthru
      _
    // Predicated region
    $region14: #{decoder_forward.1} parent=1 // pred_check
      _
    $region15: #{decoder_forward.1} parent=1 // pred_check_branch
      %67 = sbr.rel (0) target = $region17
    $region16: #{decoder_forward.1} parent=1 // pred_region
      %s69 = ssub.s32 256, 256
      %70 = vsyncadd [#allocation9], %s69
      %s71 = sshll.u32 [#allocation8], 4
      %s72 = int_to_ptr.vmem [resolvable:$true] %s71
      %77 = dma.hbm_to_vmem [thread:$0]  %s3, 256, %s72, [#allocation9], 128, 128, 8
    $region17: #{decoder_forward.1} parent=1 // pred_fallthru
      _
    // Predicated region
    $region18: #{decoder_forward.1} parent=1 // pred_check
      _
    $region19: #{decoder_forward.1} parent=1 // pred_check_branch
      %79 = sbr.rel (0) target = $region21
    $region20: #{decoder_forward.1} parent=1 // pred_region
      _
    $region21: #{decoder_forward.1} parent=1 // pred_fallthru
      _
    // Predicated region
    $region22: #{decoder_forward.1} parent=1 // pred_check
      _
    $region23: #{decoder_forward.1} parent=1 // pred_check_branch
      %81 = sbr.rel (0) target = $region25
    $region24: #{decoder_forward.1} parent=1 // pred_region
      _
    $region25: #{decoder_forward.1} parent=1 // pred_fallthru
      _
    // Predicated region
    $region26: #{decoder_forward.1} parent=1 // pred_check
      _
    $region27: #{decoder_forward.1} parent=1 // pred_check_branch
      %83 = sbr.rel (0) target = $region29
    $region28: #{decoder_forward.1} parent=1 // pred_region
      %s85 = ssub.s32 1024, 1024
      %86 = vsyncadd [#allocation9], %s85
      %s87 = sshll.u32 [#allocation10], 4
      %s88 = int_to_ptr.vmem [resolvable:$true] %s87
      %93 = dma.hbm_to_vmem [thread:$0]  %s6, 1024, %s88, [#allocation9], 128, 128, 8
    $region29: #{decoder_forward.1} parent=1 // pred_fallthru
      _
    // Predicated region
    $region30: #{decoder_forward.1} parent=1 // pred_check
      _
    $region31: #{decoder_forward.1} parent=1 // pred_check_branch
      %95 = sbr.rel (0) target = $region33
    $region32: #{decoder_forward.1} parent=1 // pred_region
      %s97 = ssub.s32 512, 512
      %98 = vsyncadd [#allocation12], %s97
      %s99 = sshll.u32 [#allocation11], 4
      %s100 = int_to_ptr.vmem [resolvable:$true] %s99
      %105 = dma.hbm_to_vmem [thread:$0]  %s7, 512, %s100, [#allocation12], 64, 64, 4
    $region33: #{decoder_forward.1} parent=1 // pred_fallthru
      _
    // Predicated region
    $region34: #{decoder_forward.1} parent=1 // pred_check
      _
    $region35: #{decoder_forward.1} parent=1 // pred_check_branch
      %107 = sbr.rel (0) target = $region37
    $region36: #{decoder_forward.1} parent=1 // pred_region
      %s109 = ssub.s32 512, 512
      %110 = vsyncadd [#allocation12], %s109
      %s111 = sshll.u32 [#allocation13], 4
      %s112 = int_to_ptr.vmem [resolvable:$true] %s111
      %117 = dma.hbm_to_vmem [thread:$0]  %s8, 512, %s112, [#allocation12], 64, 64, 4
    $region37: #{decoder_forward.1} parent=1 // pred_fallthru
      _
    // Predicated region
    $region38: #{decoder_forward.1} parent=1 // pred_check
      _
    $region39: #{decoder_forward.1} parent=1 // pred_check_branch
      %119 = sbr.rel (0) target = $region41
    $region40: #{decoder_forward.1} parent=1 // pred_region
      %s121 = ssub.s32 512, 512
      %122 = vsyncadd [#allocation15], %s121
      %s123 = sshll.u32 [#allocation14], 4
      %s124 = int_to_ptr.vmem [resolvable:$true] %s123
      %129 = dma.hbm_to_vmem [thread:$0]  %s9, 512, %s124, [#allocation15], 64, 64, 4
    $region41: #{decoder_forward.1} parent=1 // pred_fallthru
      _
    // Predicated region
    $region42: #{decoder_forward.1} parent=1 // pred_check
      _
    $region43: #{decoder_forward.1} parent=1 // pred_check_branch
      %131 = sbr.rel (0) target = $region45
    $region44: #{decoder_forward.1} parent=1 // pred_region
      %s133 = ssub.s32 512, 512
      %134 = vsyncadd [#allocation15], %s133
      %s135 = sshll.u32 [#allocation16], 4
      %s136 = int_to_ptr.vmem [resolvable:$true] %s135
      %141 = dma.hbm_to_vmem [thread:$0]  %s10, 512, %s136, [#allocation15], 64, 64, 4
    $region45: #{decoder_forward.1} parent=1 // pred_fallthru
      _
    // Predicated region
    $region46: #{decoder_forward.1} parent=1 // pred_check
      _
    $region47: #{decoder_forward.1} parent=1 // pred_check_branch
      %143 = sbr.rel (0) target = $region49
    $region48: #{decoder_forward.1} parent=1 // pred_region
      %s145 = ssub.s32 512, 512
      %146 = vsyncadd [#allocation18], %s145
      %s147 = sshll.u32 [#allocation17], 4
      %s148 = int_to_ptr.vmem [resolvable:$true] %s147
      %153 = dma.hbm_to_vmem [thread:$0]  %s11, 512, %s148, [#allocation18], 64, 64, 4
    $region49: #{decoder_forward.1} parent=1 // pred_fallthru
      _
    // Predicated region
    $region50: #{decoder_forward.1} parent=1 // pred_check
      _
    $region51: #{decoder_forward.1} parent=1 // pred_check_branch
      %155 = sbr.rel (0) target = $region53
    $region52: #{decoder_forward.1} parent=1 // pred_region
      %s157 = ssub.s32 512, 512
      %158 = vsyncadd [#allocation18], %s157
      %s159 = sshll.u32 [#allocation19], 4
      %s160 = int_to_ptr.vmem [resolvable:$true] %s159
      %165 = dma.hbm_to_vmem [thread:$0]  %s12, 512, %s160, [#allocation18], 128, 128, 8
    $region53: #{decoder_forward.1} parent=1 // pred_fallthru
      _
    // Predicated region
    $region54: #{decoder_forward.1} parent=1 // pred_check
      _
    $region55: #{decoder_forward.1} parent=1 // pred_check_branch
      %167 = sbr.rel (0) target = $region57
    $region56: #{decoder_forward.1} parent=1 // pred_region
      %s169 = ssub.s32 512, 512
      %170 = vsyncadd [#allocation21], %s169
      %s171 = sshll.u32 [#allocation20], 4
      %s172 = int_to_ptr.vmem [resolvable:$true] %s171
      %177 = dma.hbm_to_vmem [thread:$0]  %s13, 512, %s172, [#allocation21], 64, 64, 4
    $region57: #{decoder_forward.1} parent=1 // pred_fallthru
      _
    // Predicated region
    $region58: #{decoder_forward.1} parent=1 // pred_check
      _
    $region59: #{decoder_forward.1} parent=1 // pred_check_branch
      %179 = sbr.rel (0) target = $region61
    $region60: #{decoder_forward.1} parent=1 // pred_region
      %s181 = ssub.s32 512, 512
      %182 = vsyncadd [#allocation21], %s181
      %s183 = sshll.u32 [#allocation22], 4
      %s184 = int_to_ptr.vmem [resolvable:$true] %s183
      %189 = dma.hbm_to_vmem [thread:$0]  %s14, 512, %s184, [#allocation21], 64, 64, 4
    $region61: #{decoder_forward.1} parent=1 // pred_fallthru
      _
    // Predicated region
    $region62: #{decoder_forward.1} parent=1 // pred_check
      _
    $region63: #{decoder_forward.1} parent=1 // pred_check_branch
      %191 = sbr.rel (0) target = $region65
    $region64: #{decoder_forward.1} parent=1 // pred_region
      _
    $region65: #{decoder_forward.1} parent=1 // pred_fallthru
      _
    // Predicated region
    $region66: #{decoder_forward.1} parent=1 // pred_check
      _
    $region67: #{decoder_forward.1} parent=1 // pred_check_branch
      %193 = sbr.rel (0) target = $region69
    $region68: #{decoder_forward.1} parent=1 // pred_region
      _
    $region69: #{decoder_forward.1} parent=1 // pred_fallthru
      _
    // Predicated region
    $region70: #{decoder_forward.1} parent=1 // pred_check
      _
    $region71: #{decoder_forward.1} parent=1 // pred_check_branch
      %195 = sbr.rel (0) target = $region73
    $region72: #{decoder_forward.1} parent=1 // pred_region
      %196 = dma.done [#allocation3], 256
    $region73: #{decoder_forward.1} parent=1 // pred_fallthru
      _
    // Predicated region
    $region74: #{decoder_forward.1} parent=1 // pred_check
      _
    $region75: #{decoder_forward.1} parent=1 // pred_check_branch
      %198 = sbr.rel (0) target = $region77
    $region76: #{decoder_forward.1} parent=1 // pred_region
      %199 = dma.done [#allocation6], 256
    $region77: #{decoder_forward.1} parent=1 // pred_fallthru
      _
    // Predicated region
    $region78: #{decoder_forward.1} parent=1 // pred_check
      _
    $region79: #{decoder_forward.1} parent=1 // pred_check_branch
      %201 = sbr.rel (0) target = $region81
    $region80: #{decoder_forward.1} parent=1 // pred_region
      %202 = dma.done [#allocation6], 256
    $region81: #{decoder_forward.1} parent=1 // pred_fallthru
      _
    // Predicated region
    $region82: #{decoder_forward.1} parent=1 // pred_check
      _
    $region83: #{decoder_forward.1} parent=1 // pred_check_branch
      %204 = sbr.rel (0) target = $region85
    $region84: #{decoder_forward.1} parent=1 // pred_region
      %205 = dma.done [#allocation9], 256
    $region85: #{decoder_forward.1} parent=1 // pred_fallthru
      _
    // Predicated region
    $region86: #{decoder_forward.1} parent=1 // pred_check
      _
    $region87: #{decoder_forward.1} parent=1 // pred_check_branch
      %207 = sbr.rel (0) target = $region89
    $region88: #{decoder_forward.1} parent=1 // pred_region
      %208 = dma.done [#allocation9], 1024
    $region89: #{decoder_forward.1} parent=1 // pred_fallthru
      _
    // Predicated region
    $region90: #{decoder_forward.1} parent=1 // pred_check
      _
    $region91: #{decoder_forward.1} parent=1 // pred_check_branch
      %210 = sbr.rel (0) target = $region93
    $region92: #{decoder_forward.1} parent=1 // pred_region
      %211 = dma.done [#allocation12], 512
    $region93: #{decoder_forward.1} parent=1 // pred_fallthru
      _
    // Predicated region
    $region94: #{decoder_forward.1} parent=1 // pred_check
      _
    $region95: #{decoder_forward.1} parent=1 // pred_check_branch
      %213 = sbr.rel (0) target = $region97
    $region96: #{decoder_forward.1} parent=1 // pred_region
      %214 = dma.done [#allocation12], 512
    $region97: #{decoder_forward.1} parent=1 // pred_fallthru
      _
    // Predicated region
    $region98: #{decoder_forward.1} parent=1 // pred_check
      _
    $region99: #{decoder_forward.1} parent=1 // pred_check_branch
      %216 = sbr.rel (0) target = $region101
    $region100: #{decoder_forward.1} parent=1 // pred_region
      %217 = dma.done [#allocation15], 512
    $region101: #{decoder_forward.1} parent=1 // pred_fallthru
      _
    // Predicated region
    $region102: #{decoder_forward.1} parent=1 // pred_check
      _
    $region103: #{decoder_forward.1} parent=1 // pred_check_branch
      %219 = sbr.rel (0) target = $region105
    $region104: #{decoder_forward.1} parent=1 // pred_region
      %220 = dma.done [#allocation15], 512
    $region105: #{decoder_forward.1} parent=1 // pred_fallthru
      _
    // Predicated region
    $region106: #{decoder_forward.1} parent=1 // pred_check
      _
    $region107: #{decoder_forward.1} parent=1 // pred_check_branch
      %222 = sbr.rel (0) target = $region109
    $region108: #{decoder_forward.1} parent=1 // pred_region
      %223 = dma.done [#allocation18], 512
    $region109: #{decoder_forward.1} parent=1 // pred_fallthru
      _
    // Predicated region
    $region110: #{decoder_forward.1} parent=1 // pred_check
      _
    $region111: #{decoder_forward.1} parent=1 // pred_check_branch
      %225 = sbr.rel (0) target = $region113
    $region112: #{decoder_forward.1} parent=1 // pred_region
      %226 = dma.done [#allocation18], 512
    $region113: #{decoder_forward.1} parent=1 // pred_fallthru
      _
    // Predicated region
    $region114: #{decoder_forward.1} parent=1 // pred_check
      _
    $region115: #{decoder_forward.1} parent=1 // pred_check_branch
      %228 = sbr.rel (0) target = $region117
    $region116: #{decoder_forward.1} parent=1 // pred_region
      %229 = dma.done [#allocation21], 512
    $region117: #{decoder_forward.1} parent=1 // pred_fallthru
      _
    // Predicated region
    $region118: #{decoder_forward.1} parent=1 // pred_check
      _
    $region119: #{decoder_forward.1} parent=1 // pred_check_branch
      %231 = sbr.rel (0) target = $region121
    $region120: #{decoder_forward.1} parent=1 // pred_region
      %232 = dma.done [#allocation21], 512
    $region121: #{decoder_forward.1} parent=1 // pred_fallthru
      _
    %v234 = vld [vmem:[#allocation2] sm:$0xff]
    %v235 = vld [vmem:[#allocation2 + $0x8] sm:$0xff]
    %v236 = vld [vmem:[#allocation7] sm:$0xff]
    %v237 = vld [vmem:[#allocation7 + $0x8] sm:$0xff]
    %v238 = vld [vmem:[#allocation8] sm:$0xff]
    %v239 = vld [vmem:[#allocation8 + $0x8] sm:$0xff]
    %v240 = vld [vmem:[%s4] sm:$0xff]
    %v241 = vld [vmem:[%s4 + $0x8] sm:$0xff]
    %v242 = vld [vmem:[%s4 + $0x10] sm:$0xff]
    %v243 = vld [vmem:[%s4 + $0x18] sm:$0xff]
    %v244 = vld [vmem:[%s4 + $0x20] sm:$0xff]
    %v245 = vld [vmem:[%s4 + $0x28] sm:$0xff]
    %v246 = vld [vmem:[%s4 + $0x30] sm:$0xff]
    %v247 = vld [vmem:[%s4 + $0x38] sm:$0xff]
    %v248 = vld [vmem:[#allocation10] sm:$0xff]
    %v249 = vld [vmem:[#allocation10 + $0x8] sm:$0xff]
    %v250 = vld [vmem:[#allocation10 + $0x10] sm:$0xff]
    %v251 = vld [vmem:[#allocation10 + $0x18] sm:$0xff]
    %v252 = vld [vmem:[#allocation10 + $0x20] sm:$0xff]
    %v253 = vld [vmem:[#allocation10 + $0x28] sm:$0xff]
    %v254 = vld [vmem:[#allocation10 + $0x30] sm:$0xff]
    %v255 = vld [vmem:[#allocation10 + $0x38] sm:$0xff]
    %v256 = vld [vmem:[%s5] sm:$0xf]
    %v257 = vld [vmem:[%s5 + $0x4] sm:$0xf]
    %v258 = vld [vmem:[%s5 + $0x8] sm:$0xf]
    %v259 = vld [vmem:[%s5 + $0xc] sm:$0xf]
    %v260 = vld [vmem:[%s5 + $0x10] sm:$0xf]
    %v261 = vld [vmem:[%s5 + $0x14] sm:$0xf]
    %v262 = vld [vmem:[%s5 + $0x18] sm:$0xf]
    %v263 = vld [vmem:[%s5 + $0x1c] sm:$0xf]
    %v264 = vld [vmem:[#allocation11] sm:$0xf]
    %v265 = vld [vmem:[#allocation11 + $0x4] sm:$0xf]
    %v266 = vld [vmem:[#allocation11 + $0x8] sm:$0xf]
    %v267 = vld [vmem:[#allocation11 + $0xc] sm:$0xf]
    %v268 = vld [vmem:[#allocation11 + $0x10] sm:$0xf]
    %v269 = vld [vmem:[#allocation11 + $0x14] sm:$0xf]
    %v270 = vld [vmem:[#allocation11 + $0x18] sm:$0xf]
    %v271 = vld [vmem:[#allocation11 + $0x1c] sm:$0xf]
    %v272 = vld [vmem:[#allocation5] sm:$0xff]
    %v273 = vld [vmem:[#allocation5 + $0x8] sm:$0xff]
    %v274 = vpack.c.bf16 %v273, %v272
    %v275 = vld [vmem:[#allocation19] sm:$0xff]
    %v276 = vld [vmem:[#allocation19 + $0x8] sm:$0xff]
    %v277 = vld [vmem:[#allocation19 + $0x10] sm:$0xff]
    %v278 = vld [vmem:[#allocation19 + $0x18] sm:$0xff]
    %v283 = vunpack.c.l.b16 %v275
    %v284 = vunpack.c.h.b16 %v275
    %v285 = vunpack.c.l.b16 %v276
    %v286 = vunpack.c.h.b16 %v276
    %v287 = vunpack.c.l.b16 %v277
    %v288 = vunpack.c.h.b16 %v277
    %v289 = vunpack.c.l.b16 %v278
    %v290 = vunpack.c.h.b16 %v278
    %v291 = vpack.c.b16 %v285, %v283
    %v292 = vpack.c.b16 %v286, %v284
    %v293 = vpack.c.b16 %v289, %v287
    %v294 = vpack.c.b16 %v290, %v288
    %vm299 = vcmask 261120
    %v301 = vsel %vm299, %v274, 0
    %303 = vmatprep.subr.bf16.mxu0 0
    %304 = vmatpush1.bf16.msra.mxu0 0
    %305 = vmatprep.subr.bf16.mxu0 0
    %306 = vmatpush1.bf16.msra.mxu0 0
    %307 = vmatprep.subr.bf16.mxu0 0
    %308 = vmatpush1.bf16.msra.mxu0 0
    %309 = vmatprep.subr.bf16.mxu0 0
    %310 = vmatpush1.bf16.msra.mxu0 0
    %311 = vmatprep.subr.bf16.mxu0 0
    %312 = vmatpush1.bf16.msra.mxu0 0
    %313 = vmatprep.subr.bf16.mxu0 0
    %314 = vmatpush1.bf16.msra.mxu0 0
    %315 = vmatprep.subr.bf16.mxu0 %v294
    %316 = vmatpush1.bf16.msra.mxu0 %v293
    %317 = vmatprep.subr.bf16.mxu0 %v292
    %318 = vmatpush1.bf16.msra.mxu0 %v291
    %319 = vmatprep.subr.bf16.mxu0 0
    %320 = vmatpush2.bf16.msra.mxu0 0
    %321 = vmatprep.subr.bf16.mxu0 0
    %322 = vmatpush2.bf16.msra.mxu0 0
    %323 = vmatprep.subr.bf16.mxu0 0
    %324 = vmatpush2.bf16.msra.mxu0 0
    %325 = vmatprep.subr.bf16.mxu0 0
    %326 = vmatpush2.bf16.msra.mxu0 0
    %327 = vmatprep.subr.bf16.mxu0 0
    %328 = vmatpush2.bf16.msra.mxu0 0
    %329 = vmatprep.subr.bf16.mxu0 0
    %330 = vmatpush2.bf16.msra.mxu0 0
    %331 = vmatprep.subr.bf16.mxu0 0
    %332 = vmatpush2.bf16.msra.mxu0 0
    %333 = vmatprep.subr.bf16.mxu0 0
    %334 = vmatpush2.bf16.msra.mxu0 0
    %335 = vmatprep.mubr.bf16.mxu0 0
    %336 = vmatmul.mubr.bf16.gmra.mxu0 %v301
    %v337 = vpop.f32.mrf.mxu0
    %v338 = vadd.f32 0.0, %v337
    %v339 = vpop.f32.mrf.mxu0
    %v340 = vadd.f32 0.0, %v339
    %v341 = vpop.f32.mrf.mxu0
    %v342 = vadd.f32 0.0, %v341
    %v343 = vpop.f32.mrf.mxu0
    %v344 = vadd.f32 0.0, %v343
    %345 = vdwg.mxu0
    %v346 = vmul.f32 %v338, %v248
    %v347 = vmul.f32 %v342, %v249
    %v348 = vmul.f32 %v338, %v250
    %v349 = vmul.f32 %v342, %v251
    %v350 = vmul.f32 %v338, %v252
    %v351 = vmul.f32 %v342, %v253
    %v352 = vmul.f32 %v338, %v254
    %v353 = vmul.f32 %v342, %v255
    %v354 = vpack.c.bf16 %v347, %v346
    %v355 = vpack.c.bf16 %v349, %v348
    %v356 = vpack.c.bf16 %v351, %v350
    %v357 = vpack.c.bf16 %v353, %v352
    %v358 = vmul.f32 %v340, %v248
    %v359 = vmul.f32 %v344, %v249
    %v360 = vmul.f32 %v340, %v250
    %v361 = vmul.f32 %v344, %v251
    %v362 = vmul.f32 %v340, %v252
    %v363 = vmul.f32 %v344, %v253
    %v364 = vmul.f32 %v340, %v254
    %v365 = vmul.f32 %v344, %v255
    %v366 = vpack.c.bf16 %v359, %v358
    %v367 = vpack.c.bf16 %v361, %v360
    %v368 = vpack.c.bf16 %v363, %v362
    %v369 = vpack.c.bf16 %v365, %v364
    %v370 = vld [vmem:[%s16] sm:$0xff]
    %v371 = vpack.c.bf16 %v235, %v234
    %v372 = vld [vmem:[#allocation13] sm:$0xf]
    %v373 = vld [vmem:[#allocation13 + $0x4] sm:$0xf]
    %v374 = vld [vmem:[#allocation13 + $0x8] sm:$0xf]
    %v375 = vld [vmem:[#allocation13 + $0xc] sm:$0xf]
    %v380 = vunpack.c.l.b16 %v372
    %v381 = vunpack.c.l.b16 %v373
    %v382 = vunpack.c.l.b16 %v374
    %v383 = vunpack.c.l.b16 %v375
    %v384 = vpack.c.b16 %v381, %v380
    %v385 = vpack.c.b16 %v383, %v382
    %v389 = vsel %vm299, %v371, 0
    %391 = vmatprep.subr.bf16.mxu0 0
    %392 = vmatpush1.bf16.msra.mxu0 0
    %393 = vmatprep.subr.bf16.mxu0 0
    %394 = vmatpush1.bf16.msra.mxu0 0
    %395 = vmatprep.subr.bf16.mxu0 0
    %396 = vmatpush1.bf16.msra.mxu0 0
    %397 = vmatprep.subr.bf16.mxu0 0
    %398 = vmatpush1.bf16.msra.mxu0 0
    %399 = vmatprep.subr.bf16.mxu0 0
    %400 = vmatpush1.bf16.msra.mxu0 0
    %401 = vmatprep.subr.bf16.mxu0 0
    %402 = vmatpush1.bf16.msra.mxu0 0
    %403 = vmatprep.subr.bf16.mxu0 0
    %404 = vmatpush1.bf16.msra.mxu0 %v385
    %405 = vmatprep.subr.bf16.mxu0 0
    %406 = vmatpush1.bf16.msra.mxu0 %v384
    %407 = vmatprep.subr.bf16.mxu0 0
    %408 = vmatpush2.bf16.msra.mxu0 0
    %409 = vmatprep.subr.bf16.mxu0 0
    %410 = vmatpush2.bf16.msra.mxu0 0
    %411 = vmatprep.subr.bf16.mxu0 0
    %412 = vmatpush2.bf16.msra.mxu0 0
    %413 = vmatprep.subr.bf16.mxu0 0
    %414 = vmatpush2.bf16.msra.mxu0 0
    %415 = vmatprep.subr.bf16.mxu0 0
    %416 = vmatpush2.bf16.msra.mxu0 0
    %417 = vmatprep.subr.bf16.mxu0 0
    %418 = vmatpush2.bf16.msra.mxu0 0
    %419 = vmatprep.subr.bf16.mxu0 0
    %420 = vmatpush2.bf16.msra.mxu0 0
    %421 = vmatprep.subr.bf16.mxu0 0
    %422 = vmatpush2.bf16.msra.mxu0 0
    %423 = vmatprep.mubr.bf16.mxu0 0
    %424 = vmatmul.mubr.bf16.gmra.mxu0 %v389
    %v425 = vpop.f32.mrf.mxu0
    %v426 = vadd.f32 0.0, %v425
    %v427 = vpop.f32.mrf.mxu0
    %v428 = vpop.f32.mrf.mxu0
    %v429 = vadd.f32 0.0, %v428
    %v430 = vpop.f32.mrf.mxu0
    %431 = vdwg.mxu0
    %v432 = vpack.c.bf16 %v429, %v426
    %v433 = vld [vmem:[#allocation14] sm:$0xf]
    %v434 = vld [vmem:[#allocation14 + $0x4] sm:$0xf]
    %v435 = vld [vmem:[#allocation14 + $0x8] sm:$0xf]
    %v436 = vld [vmem:[#allocation14 + $0xc] sm:$0xf]
    %v441 = vunpack.c.l.b16 %v433
    %v442 = vunpack.c.l.b16 %v434
    %v443 = vunpack.c.l.b16 %v435
    %v444 = vunpack.c.l.b16 %v436
    %v445 = vpack.c.b16 %v442, %v441
    %v446 = vpack.c.b16 %v444, %v443
    %449 = vmatprep.subr.bf16.mxu0 0
    %450 = vmatpush1.bf16.msra.mxu0 0
    %451 = vmatprep.subr.bf16.mxu0 0
    %452 = vmatpush1.bf16.msra.mxu0 0
    %453 = vmatprep.subr.bf16.mxu0 0
    %454 = vmatpush1.bf16.msra.mxu0 0
    %455 = vmatprep.subr.bf16.mxu0 0
    %456 = vmatpush1.bf16.msra.mxu0 0
    %457 = vmatprep.subr.bf16.mxu0 0
    %458 = vmatpush1.bf16.msra.mxu0 0
    %459 = vmatprep.subr.bf16.mxu0 0
    %460 = vmatpush1.bf16.msra.mxu0 0
    %461 = vmatprep.subr.bf16.mxu0 0
    %462 = vmatpush1.bf16.msra.mxu0 %v446
    %463 = vmatprep.subr.bf16.mxu0 0
    %464 = vmatpush1.bf16.msra.mxu0 %v445
    %465 = vmatprep.subr.bf16.mxu0 0
    %466 = vmatpush2.bf16.msra.mxu0 0
    %467 = vmatprep.subr.bf16.mxu0 0
    %468 = vmatpush2.bf16.msra.mxu0 0
    %469 = vmatprep.subr.bf16.mxu0 0
    %470 = vmatpush2.bf16.msra.mxu0 0
    %471 = vmatprep.subr.bf16.mxu0 0
    %472 = vmatpush2.bf16.msra.mxu0 0
    %473 = vmatprep.subr.bf16.mxu0 0
    %474 = vmatpush2.bf16.msra.mxu0 0
    %475 = vmatprep.subr.bf16.mxu0 0
    %476 = vmatpush2.bf16.msra.mxu0 0
    %477 = vmatprep.subr.bf16.mxu0 0
    %478 = vmatpush2.bf16.msra.mxu0 0
    %479 = vmatprep.subr.bf16.mxu0 0
    %480 = vmatpush2.bf16.msra.mxu0 0
    %481 = vmatprep.mubr.bf16.mxu0 0
    %482 = vmatmul.mubr.bf16.gmra.mxu0 %v389
    %v483 = vpop.f32.mrf.mxu0
    %v484 = vadd.f32 0.0, %v483
    %v485 = vpop.f32.mrf.mxu0
    %v486 = vpop.f32.mrf.mxu0
    %v487 = vadd.f32 0.0, %v486
    %v488 = vpop.f32.mrf.mxu0
    %489 = vdwg.mxu0
    %v490 = vmul.f32 %v484, %v240
    %v491 = vmul.f32 %v487, %v241
    %v492 = vmul.f32 %v484, %v242
    %v493 = vmul.f32 %v487, %v243
    %v494 = vmul.f32 %v484, %v244
    %v495 = vmul.f32 %v487, %v245
    %v496 = vmul.f32 %v484, %v246
    %v497 = vmul.f32 %v487, %v247
    %v498 = vpack.c.bf16 %v491, %v490
    %v499 = vpack.c.bf16 %v493, %v492
    %v500 = vpack.c.bf16 %v495, %v494
    %v501 = vpack.c.bf16 %v497, %v496
    %v502 = vld [vmem:[#allocation16] sm:$0xf]
    %v503 = vld [vmem:[#allocation16 + $0x4] sm:$0xf]
    %v504 = vld [vmem:[#allocation16 + $0x8] sm:$0xf]
    %v505 = vld [vmem:[#allocation16 + $0xc] sm:$0xf]
    %vm506 = vcmask 523264
    %v508 = vsel %vm506, %v432, 0
    %v511 = vsel %vm506, %v498, 0
    %v514 = vsel %vm506, %v499, 0
    %v517 = vsel %vm506, %v500, 0
    %v520 = vsel %vm506, %v501, 0
    %522 = vmatprep.subr.bf16.mxu0 0
    %523 = vmatpush1.bf16.xpose.msra.mxu0 0
    %524 = vmatprep.subr.bf16.mxu0 0
    %525 = vmatpush1.bf16.xpose.msra.mxu0 0
    %526 = vmatprep.subr.bf16.mxu0 0
    %527 = vmatpush1.bf16.xpose.msra.mxu0 0
    %528 = vmatprep.subr.bf16.mxu0 0
    %529 = vmatpush1.bf16.xpose.msra.mxu0 0
    %530 = vmatprep.subr.bf16.mxu0 0
    %531 = vmatpush1.bf16.xpose.msra.mxu0 %v520
    %532 = vmatprep.subr.bf16.mxu0 0
    %533 = vmatpush1.bf16.xpose.msra.mxu0 %v517
    %534 = vmatprep.subr.bf16.mxu0 0
    %535 = vmatpush1.bf16.xpose.msra.mxu0 %v514
    %536 = vmatprep.subr.bf16.mxu0 0
    %537 = vmatpush1.bf16.xpose.msra.mxu0 %v511
    %538 = vmatprep.subr.bf16.mxu0 0
    %539 = vmatpush2.bf16.xpose.msra.mxu0 0
    %540 = vmatprep.subr.bf16.mxu0 0
    %541 = vmatpush2.bf16.xpose.msra.mxu0 0
    %542 = vmatprep.subr.bf16.mxu0 0
    %543 = vmatpush2.bf16.xpose.msra.mxu0 0
    %544 = vmatprep.subr.bf16.mxu0 0
    %545 = vmatpush2.bf16.xpose.msra.mxu0 0
    %546 = vmatprep.subr.bf16.mxu0 0
    %547 = vmatpush2.bf16.xpose.msra.mxu0 0
    %548 = vmatprep.subr.bf16.mxu0 0
    %549 = vmatpush2.bf16.xpose.msra.mxu0 0
    %550 = vmatprep.subr.bf16.mxu0 0
    %551 = vmatpush2.bf16.xpose.msra.mxu0 0
    %552 = vmatprep.subr.bf16.mxu0 0
    %553 = vmatpush2.bf16.xpose.msra.mxu0 0
    %554 = vmatprep.mubr.bf16.mxu0 0
    %555 = vmatmul.mubr.bf16.gmra.mxu0 %v508
    %v556 = vpop.f32.mrf.mxu0
    %v557 = vadd.f32 %v236, %v556
    %v558 = vpop.f32.mrf.mxu0
    %v559 = vpop.f32.mrf.mxu0
    %v560 = vadd.f32 %v237, %v559
    %v561 = vpop.f32.mrf.mxu0
    %562 = vdwg.mxu0
    %v563 = vmul.f32 %v557, 1.442695
    %v564 = vpow.pop %v563
    %v565 = vmul.f32 %v560, 1.442695
    %v566 = vpow.pop %v565
    %v567 = vpack.c.bf16 %v566, %v564
    %v576 = vunpack.c.l.b16 %v256
    %v577 = vunpack.c.l.b16 %v257
    %v578 = vunpack.c.l.b16 %v258
    %v579 = vunpack.c.l.b16 %v259
    %v580 = vunpack.c.l.b16 %v260
    %v581 = vunpack.c.l.b16 %v261
    %v582 = vunpack.c.l.b16 %v262
    %v583 = vunpack.c.l.b16 %v263
    %v584 = vpack.c.b16 %v577, %v576
    %v585 = vpack.c.b16 %v579, %v578
    %v586 = vpack.c.b16 %v581, %v580
    %v587 = vpack.c.b16 %v583, %v582
    %v593 = vsel %vm506, %v567, 0
    %595 = vmatprep.subr.bf16.mxu0 0
    %596 = vmatpush1.bf16.msra.mxu0 0
    %597 = vmatprep.subr.bf16.mxu0 0
    %598 = vmatpush1.bf16.msra.mxu0 0
    %599 = vmatprep.subr.bf16.mxu0 0
    %600 = vmatpush1.bf16.msra.mxu0 0
    %601 = vmatprep.subr.bf16.mxu0 0
    %602 = vmatpush1.bf16.msra.mxu0 0
    %603 = vmatprep.subr.bf16.mxu0 0
    %604 = vmatpush1.bf16.msra.mxu0 %v587
    %605 = vmatprep.subr.bf16.mxu0 0
    %606 = vmatpush1.bf16.msra.mxu0 %v586
    %607 = vmatprep.subr.bf16.mxu0 0
    %608 = vmatpush1.bf16.msra.mxu0 %v585
    %609 = vmatprep.subr.bf16.mxu0 0
    %610 = vmatpush1.bf16.msra.mxu0 %v584
    %611 = vmatprep.subr.bf16.mxu0 0
    %612 = vmatpush2.bf16.msra.mxu0 0
    %613 = vmatprep.subr.bf16.mxu0 0
    %614 = vmatpush2.bf16.msra.mxu0 0
    %615 = vmatprep.subr.bf16.mxu0 0
    %616 = vmatpush2.bf16.msra.mxu0 0
    %617 = vmatprep.subr.bf16.mxu0 0
    %618 = vmatpush2.bf16.msra.mxu0 0
    %619 = vmatprep.subr.bf16.mxu0 0
    %620 = vmatpush2.bf16.msra.mxu0 0
    %621 = vmatprep.subr.bf16.mxu0 0
    %622 = vmatpush2.bf16.msra.mxu0 0
    %623 = vmatprep.subr.bf16.mxu0 0
    %624 = vmatpush2.bf16.msra.mxu0 0
    %625 = vmatprep.subr.bf16.mxu0 0
    %626 = vmatpush2.bf16.msra.mxu0 0
    %627 = vmatprep.mubr.bf16.mxu0 0
    %628 = vmatmul.mubr.bf16.gmra.mxu0 %v593
    %v629 = vpop.f32.mrf.mxu0
    %v630 = vadd.f32 0.0, %v629
    %v631 = vpop.f32.mrf.mxu0
    %v632 = vpop.f32.mrf.mxu0
    %v633 = vadd.f32 0.0, %v632
    %v634 = vpop.f32.mrf.mxu0
    %635 = vdwg.mxu0
    %v636 = vrcp.pop %v630
    %v637 = vrcp.pop %v633
    %v638 = vmul.f32 %v564, %v636
    %v639 = vmul.f32 %v566, %v637
    %v640 = vpack.c.bf16 %v639, %v638
    %v642 = vsel %vm506, %v640, 0
    %644 = vmatprep.subr.bf16.mxu0 0
    %645 = vmatpush1.bf16.msra.mxu0 0
    %646 = vmatprep.subr.bf16.mxu0 0
    %647 = vmatpush1.bf16.msra.mxu0 0
    %648 = vmatprep.subr.bf16.mxu0 0
    %649 = vmatpush1.bf16.msra.mxu0 0
    %650 = vmatprep.subr.bf16.mxu0 0
    %651 = vmatpush1.bf16.msra.mxu0 0
    %652 = vmatprep.subr.bf16.mxu0 0
    %653 = vmatpush1.bf16.msra.mxu0 %v501
    %654 = vmatprep.subr.bf16.mxu0 0
    %655 = vmatpush1.bf16.msra.mxu0 %v500
    %656 = vmatprep.subr.bf16.mxu0 0
    %657 = vmatpush1.bf16.msra.mxu0 %v499
    %658 = vmatprep.subr.bf16.mxu0 0
    %659 = vmatpush1.bf16.msra.mxu0 %v498
    %660 = vmatprep.subr.bf16.mxu0 0
    %661 = vmatpush2.bf16.msra.mxu0 0
    %662 = vmatprep.subr.bf16.mxu0 0
    %663 = vmatpush2.bf16.msra.mxu0 0
    %664 = vmatprep.subr.bf16.mxu0 0
    %665 = vmatpush2.bf16.msra.mxu0 0
    %666 = vmatprep.subr.bf16.mxu0 0
    %667 = vmatpush2.bf16.msra.mxu0 0
    %668 = vmatprep.subr.bf16.mxu0 0
    %669 = vmatpush2.bf16.msra.mxu0 0
    %670 = vmatprep.subr.bf16.mxu0 0
    %671 = vmatpush2.bf16.msra.mxu0 0
    %672 = vmatprep.subr.bf16.mxu0 0
    %673 = vmatpush2.bf16.msra.mxu0 0
    %674 = vmatprep.subr.bf16.mxu0 0
    %675 = vmatpush2.bf16.msra.mxu0 0
    %676 = vmatprep.mubr.bf16.mxu0 0
    %677 = vmatmul.mubr.bf16.gmra.mxu0 %v642
    %v678 = vpop.f32.mrf.mxu0
    %v679 = vadd.f32 0.0, %v678
    %v680 = vpop.f32.mrf.mxu0
    %v681 = vpop.f32.mrf.mxu0
    %v682 = vadd.f32 0.0, %v681
    %v683 = vpop.f32.mrf.mxu0
    %684 = vdwg.mxu0
    %v685 = vpack.c.bf16 %v682, %v679
    %v690 = vunpack.c.l.b16 %v502
    %v691 = vunpack.c.l.b16 %v503
    %v692 = vunpack.c.l.b16 %v504
    %v693 = vunpack.c.l.b16 %v505
    %v694 = vpack.c.b16 %v691, %v690
    %v695 = vpack.c.b16 %v693, %v692
    %v699 = vsel %vm299, %v685, 0
    %701 = vmatprep.subr.bf16.mxu0 0
    %702 = vmatpush1.bf16.msra.mxu0 0
    %703 = vmatprep.subr.bf16.mxu0 0
    %704 = vmatpush1.bf16.msra.mxu0 0
    %705 = vmatprep.subr.bf16.mxu0 0
    %706 = vmatpush1.bf16.msra.mxu0 0
    %707 = vmatprep.subr.bf16.mxu0 0
    %708 = vmatpush1.bf16.msra.mxu0 0
    %709 = vmatprep.subr.bf16.mxu0 0
    %710 = vmatpush1.bf16.msra.mxu0 0
    %711 = vmatprep.subr.bf16.mxu0 0
    %712 = vmatpush1.bf16.msra.mxu0 0
    %713 = vmatprep.subr.bf16.mxu0 0
    %714 = vmatpush1.bf16.msra.mxu0 %v695
    %715 = vmatprep.subr.bf16.mxu0 0
    %716 = vmatpush1.bf16.msra.mxu0 %v694
    %717 = vmatprep.subr.bf16.mxu0 0
    %718 = vmatpush2.bf16.msra.mxu0 0
    %719 = vmatprep.subr.bf16.mxu0 0
    %720 = vmatpush2.bf16.msra.mxu0 0
    %721 = vmatprep.subr.bf16.mxu0 0
    %722 = vmatpush2.bf16.msra.mxu0 0
    %723 = vmatprep.subr.bf16.mxu0 0
    %724 = vmatpush2.bf16.msra.mxu0 0
    %725 = vmatprep.subr.bf16.mxu0 0
    %726 = vmatpush2.bf16.msra.mxu0 0
    %727 = vmatprep.subr.bf16.mxu0 0
    %728 = vmatpush2.bf16.msra.mxu0 0
    %729 = vmatprep.subr.bf16.mxu0 0
    %730 = vmatpush2.bf16.msra.mxu0 0
    %731 = vmatprep.subr.bf16.mxu0 0
    %732 = vmatpush2.bf16.msra.mxu0 0
    %733 = vmatprep.mubr.bf16.mxu0 0
    %734 = vmatmul.mubr.bf16.gmra.mxu0 %v699
    %v735 = vpop.f32.mrf.mxu0
    %v736 = vadd.f32 0.0, %v735
    %v737 = vpop.f32.mrf.mxu0
    %v738 = vpop.f32.mrf.mxu0
    %v739 = vadd.f32 0.0, %v738
    %v740 = vpop.f32.mrf.mxu0
    %741 = vdwg.mxu0
    %v742 = vadd.f32 %v234, %v736
    %v743 = vadd.f32 %v235, %v739
    %v744 = vsel %vm299, %v742, 0.0
    %745 = vadd.xlane.f32.xlu0 %v744
    %v746 = vpop.xlane.xlu0 %745
    %v747 = vsel %vm299, %v743, 0.0
    %748 = vadd.xlane.f32.xlu0 %v747
    %v749 = vpop.xlane.xlu0 %748
    %v750 = vrcp.pop 32.0
    %v751 = vmul.f32 %v746, %v750
    %v752 = vmul.f32 %v749, %v750
    %v753 = vmul.f32 %v742, %v742
    %v754 = vmul.f32 %v743, %v743
    %v755 = vsel %vm299, %v753, 0.0
    %756 = vadd.xlane.f32.xlu0 %v755
    %v757 = vpop.xlane.xlu0 %756
    %v758 = vsel %vm299, %v754, 0.0
    %759 = vadd.xlane.f32.xlu0 %v758
    %v760 = vpop.xlane.xlu0 %759
    %v761 = vmul.f32 %v757, %v750
    %v762 = vmul.f32 %v760, %v750
    %v763 = vmul.f32 %v751, %v751
    %v764 = vmul.f32 %v752, %v752
    %v765 = vsub.f32 %v761, %v763
    %v766 = vsub.f32 %v762, %v764
    %v767 = vsub.f32 %v742, %v751
    %v768 = vsub.f32 %v743, %v752
    %v769 = vadd.f32 %v765, 1e-05
    %v770 = vadd.f32 %v766, 1e-05
    %v771 = vrsqrt.pop %v769
    %v772 = vrsqrt.pop %v770
    %v773 = vmul.f32 %v767, %v771
    %v774 = vmul.f32 %v768, %v772
    %v775 = vlaneseq
    %v776 = vshrl.u32 %v775, 7
    %v777 = vsub.s32 2, %v776
    %v778 = vrot.slane %v370, %v777
    %v779 = vmul.f32 %v773, %v778
    %v780 = vmul.f32 %v774, %v778
    %v781 = vlaneseq
    %v782 = vshrl.u32 %v781, 7
    %v783 = vsub.s32 3, %v782
    %v784 = vrot.slane %v370, %v783
    %v785 = vadd.f32 %v779, %v784
    %v786 = vadd.f32 %v780, %v784
    %v787 = vpack.c.bf16 %v786, %v785
    %v788 = vld [vmem:[#allocation17] sm:$0xf]
    %v789 = vld [vmem:[#allocation17 + $0x4] sm:$0xf]
    %v790 = vld [vmem:[#allocation17 + $0x8] sm:$0xf]
    %v791 = vld [vmem:[#allocation17 + $0xc] sm:$0xf]
    %v796 = vunpack.c.l.b16 %v788
    %v797 = vunpack.c.l.b16 %v789
    %v798 = vunpack.c.l.b16 %v790
    %v799 = vunpack.c.l.b16 %v791
    %v800 = vpack.c.b16 %v797, %v796
    %v801 = vpack.c.b16 %v799, %v798
    %v805 = vsel %vm299, %v787, 0
    %807 = vmatprep.subr.bf16.mxu0 0
    %808 = vmatpush1.bf16.msra.mxu0 0
    %809 = vmatprep.subr.bf16.mxu0 0
    %810 = vmatpush1.bf16.msra.mxu0 0
    %811 = vmatprep.subr.bf16.mxu0 0
    %812 = vmatpush1.bf16.msra.mxu0 0
    %813 = vmatprep.subr.bf16.mxu0 0
    %814 = vmatpush1.bf16.msra.mxu0 0
    %815 = vmatprep.subr.bf16.mxu0 0
    %816 = vmatpush1.bf16.msra.mxu0 0
    %817 = vmatprep.subr.bf16.mxu0 0
    %818 = vmatpush1.bf16.msra.mxu0 0
    %819 = vmatprep.subr.bf16.mxu0 0
    %820 = vmatpush1.bf16.msra.mxu0 %v801
    %821 = vmatprep.subr.bf16.mxu0 0
    %822 = vmatpush1.bf16.msra.mxu0 %v800
    %823 = vmatprep.subr.bf16.mxu0 0
    %824 = vmatpush2.bf16.msra.mxu0 0
    %825 = vmatprep.subr.bf16.mxu0 0
    %826 = vmatpush2.bf16.msra.mxu0 0
    %827 = vmatprep.subr.bf16.mxu0 0
    %828 = vmatpush2.bf16.msra.mxu0 0
    %829 = vmatprep.subr.bf16.mxu0 0
    %830 = vmatpush2.bf16.msra.mxu0 0
    %831 = vmatprep.subr.bf16.mxu0 0
    %832 = vmatpush2.bf16.msra.mxu0 0
    %833 = vmatprep.subr.bf16.mxu0 0
    %834 = vmatpush2.bf16.msra.mxu0 0
    %835 = vmatprep.subr.bf16.mxu0 0
    %836 = vmatpush2.bf16.msra.mxu0 0
    %837 = vmatprep.subr.bf16.mxu0 0
    %838 = vmatpush2.bf16.msra.mxu0 0
    %839 = vmatprep.mubr.bf16.mxu0 0
    %840 = vmatmul.mubr.bf16.gmra.mxu0 %v805
    %v841 = vpop.f32.mrf.mxu0
    %v842 = vadd.f32 0.0, %v841
    %v843 = vpop.f32.mrf.mxu0
    %v844 = vpop.f32.mrf.mxu0
    %v845 = vadd.f32 0.0, %v844
    %v846 = vpop.f32.mrf.mxu0
    %847 = vdwg.mxu0
    %v848 = vpack.c.bf16 %v845, %v842
    %v849 = vld [vmem:[#allocation20] sm:$0xf]
    %v850 = vld [vmem:[#allocation20 + $0x4] sm:$0xf]
    %v851 = vld [vmem:[#allocation20 + $0x8] sm:$0xf]
    %v852 = vld [vmem:[#allocation20 + $0xc] sm:$0xf]
    %v854 = vsel %vm506, %v848, 0
    %v857 = vsel %vm506, %v354, 0
    %v860 = vsel %vm506, %v355, 0
    %v863 = vsel %vm506, %v356, 0
    %v866 = vsel %vm506, %v357, 0
    %868 = vmatprep.subr.bf16.mxu0 0
    %869 = vmatpush1.bf16.xpose.msra.mxu0 0
    %870 = vmatprep.subr.bf16.mxu0 0
    %871 = vmatpush1.bf16.xpose.msra.mxu0 0
    %872 = vmatprep.subr.bf16.mxu0 0
    %873 = vmatpush1.bf16.xpose.msra.mxu0 0
    %874 = vmatprep.subr.bf16.mxu0 0
    %875 = vmatpush1.bf16.xpose.msra.mxu0 0
    %876 = vmatprep.subr.bf16.mxu0 0
    %877 = vmatpush1.bf16.xpose.msra.mxu0 %v866
    %878 = vmatprep.subr.bf16.mxu0 0
    %879 = vmatpush1.bf16.xpose.msra.mxu0 %v863
    %880 = vmatprep.subr.bf16.mxu0 0
    %881 = vmatpush1.bf16.xpose.msra.mxu0 %v860
    %882 = vmatprep.subr.bf16.mxu0 0
    %883 = vmatpush1.bf16.xpose.msra.mxu0 %v857
    %884 = vmatprep.subr.bf16.mxu0 0
    %885 = vmatpush2.bf16.xpose.msra.mxu0 0
    %886 = vmatprep.subr.bf16.mxu0 0
    %887 = vmatpush2.bf16.xpose.msra.mxu0 0
    %888 = vmatprep.subr.bf16.mxu0 0
    %889 = vmatpush2.bf16.xpose.msra.mxu0 0
    %890 = vmatprep.subr.bf16.mxu0 0
    %891 = vmatpush2.bf16.xpose.msra.mxu0 0
    %892 = vmatprep.subr.bf16.mxu0 0
    %893 = vmatpush2.bf16.xpose.msra.mxu0 0
    %894 = vmatprep.subr.bf16.mxu0 0
    %895 = vmatpush2.bf16.xpose.msra.mxu0 0
    %896 = vmatprep.subr.bf16.mxu0 0
    %897 = vmatpush2.bf16.xpose.msra.mxu0 0
    %898 = vmatprep.subr.bf16.mxu0 0
    %899 = vmatpush2.bf16.xpose.msra.mxu0 0
    %900 = vmatprep.mubr.bf16.mxu0 0
    %901 = vmatmul.mubr.bf16.gmra.mxu0 %v854
    %v902 = vpop.f32.mrf.mxu0
    %v903 = vadd.f32 %v238, %v902
    %v904 = vpop.f32.mrf.mxu0
    %v905 = vpop.f32.mrf.mxu0
    %v906 = vadd.f32 %v239, %v905
    %v907 = vpop.f32.mrf.mxu0
    %908 = vdwg.mxu0
    %v909 = vmul.f32 %v903, 1.442695
    %v910 = vpow.pop %v909
    %v911 = vmul.f32 %v906, 1.442695
    %v912 = vpow.pop %v911
    %v913 = vpack.c.bf16 %v912, %v910
    %v922 = vunpack.c.l.b16 %v264
    %v923 = vunpack.c.l.b16 %v265
    %v924 = vunpack.c.l.b16 %v266
    %v925 = vunpack.c.l.b16 %v267
    %v926 = vunpack.c.l.b16 %v268
    %v927 = vunpack.c.l.b16 %v269
    %v928 = vunpack.c.l.b16 %v270
    %v929 = vunpack.c.l.b16 %v271
    %v930 = vpack.c.b16 %v923, %v922
    %v931 = vpack.c.b16 %v925, %v924
    %v932 = vpack.c.b16 %v927, %v926
    %v933 = vpack.c.b16 %v929, %v928
    %v939 = vsel %vm506, %v913, 0
    %941 = vmatprep.subr.bf16.mxu0 0
    %942 = vmatpush1.bf16.msra.mxu0 0
    %943 = vmatprep.subr.bf16.mxu0 0
    %944 = vmatpush1.bf16.msra.mxu0 0
    %945 = vmatprep.subr.bf16.mxu0 0
    %946 = vmatpush1.bf16.msra.mxu0 0
    %947 = vmatprep.subr.bf16.mxu0 0
    %948 = vmatpush1.bf16.msra.mxu0 0
    %949 = vmatprep.subr.bf16.mxu0 0
    %950 = vmatpush1.bf16.msra.mxu0 %v933
    %951 = vmatprep.subr.bf16.mxu0 0
    %952 = vmatpush1.bf16.msra.mxu0 %v932
    %953 = vmatprep.subr.bf16.mxu0 0
    %954 = vmatpush1.bf16.msra.mxu0 %v931
    %955 = vmatprep.subr.bf16.mxu0 0
    %956 = vmatpush1.bf16.msra.mxu0 %v930
    %957 = vmatprep.subr.bf16.mxu0 0
    %958 = vmatpush2.bf16.msra.mxu0 0
    %959 = vmatprep.subr.bf16.mxu0 0
    %960 = vmatpush2.bf16.msra.mxu0 0
    %961 = vmatprep.subr.bf16.mxu0 0
    %962 = vmatpush2.bf16.msra.mxu0 0
    %963 = vmatprep.subr.bf16.mxu0 0
    %964 = vmatpush2.bf16.msra.mxu0 0
    %965 = vmatprep.subr.bf16.mxu0 0
    %966 = vmatpush2.bf16.msra.mxu0 0
    %967 = vmatprep.subr.bf16.mxu0 0
    %968 = vmatpush2.bf16.msra.mxu0 0
    %969 = vmatprep.subr.bf16.mxu0 0
    %970 = vmatpush2.bf16.msra.mxu0 0
    %971 = vmatprep.subr.bf16.mxu0 0
    %972 = vmatpush2.bf16.msra.mxu0 0
    %973 = vmatprep.mubr.bf16.mxu0 0
    %974 = vmatmul.mubr.bf16.gmra.mxu0 %v939
    %v975 = vpop.f32.mrf.mxu0
    %v976 = vadd.f32 0.0, %v975
    %v977 = vpop.f32.mrf.mxu0
    %v978 = vpop.f32.mrf.mxu0
    %v979 = vadd.f32 0.0, %v978
    %v980 = vpop.f32.mrf.mxu0
    %981 = vdwg.mxu0
    %v982 = vrcp.pop %v976
    %v983 = vrcp.pop %v979
    %v984 = vmul.f32 %v910, %v982
    %v985 = vmul.f32 %v912, %v983
    %v986 = vpack.c.bf16 %v985, %v984
    %v988 = vsel %vm506, %v986, 0
    %990 = vmatprep.subr.bf16.mxu0 0
    %991 = vmatpush1.bf16.msra.mxu0 0
    %992 = vmatprep.subr.bf16.mxu0 0
    %993 = vmatpush1.bf16.msra.mxu0 0
    %994 = vmatprep.subr.bf16.mxu0 0
    %995 = vmatpush1.bf16.msra.mxu0 0
    %996 = vmatprep.subr.bf16.mxu0 0
    %997 = vmatpush1.bf16.msra.mxu0 0
    %998 = vmatprep.subr.bf16.mxu0 0
    %999 = vmatpush1.bf16.msra.mxu0 %v357
    %1000 = vmatprep.subr.bf16.mxu0 0
    %1001 = vmatpush1.bf16.msra.mxu0 %v356
    %1002 = vmatprep.subr.bf16.mxu0 0
    %1003 = vmatpush1.bf16.msra.mxu0 %v355
    %1004 = vmatprep.subr.bf16.mxu0 0
    %1005 = vmatpush1.bf16.msra.mxu0 %v354
    %1006 = vmatprep.subr.bf16.mxu0 0
    %1007 = vmatpush2.bf16.msra.mxu0 0
    %1008 = vmatprep.subr.bf16.mxu0 0
    %1009 = vmatpush2.bf16.msra.mxu0 0
    %1010 = vmatprep.subr.bf16.mxu0 0
    %1011 = vmatpush2.bf16.msra.mxu0 0
    %1012 = vmatprep.subr.bf16.mxu0 0
    %1013 = vmatpush2.bf16.msra.mxu0 0
    %1014 = vmatprep.subr.bf16.mxu0 0
    %1015 = vmatpush2.bf16.msra.mxu0 0
    %1016 = vmatprep.subr.bf16.mxu0 0
    %1017 = vmatpush2.bf16.msra.mxu0 0
    %1018 = vmatprep.subr.bf16.mxu0 0
    %1019 = vmatpush2.bf16.msra.mxu0 0
    %1020 = vmatprep.subr.bf16.mxu0 0
    %1021 = vmatpush2.bf16.msra.mxu0 0
    %1022 = vmatprep.mubr.bf16.mxu0 0
    %1023 = vmatmul.mubr.bf16.gmra.mxu0 %v988
    %v1024 = vpop.f32.mrf.mxu0
    %v1025 = vadd.f32 0.0, %v1024
    %v1026 = vpop.f32.mrf.mxu0
    %v1027 = vpop.f32.mrf.mxu0
    %v1028 = vadd.f32 0.0, %v1027
    %v1029 = vpop.f32.mrf.mxu0
    %1030 = vdwg.mxu0
    %v1031 = vpack.c.bf16 %v1028, %v1025
    %v1036 = vunpack.c.l.b16 %v849
    %v1037 = vunpack.c.l.b16 %v850
    %v1038 = vunpack.c.l.b16 %v851
    %v1039 = vunpack.c.l.b16 %v852
    %v1040 = vpack.c.b16 %v1037, %v1036
    %v1041 = vpack.c.b16 %v1039, %v1038
    %v1045 = vsel %vm299, %v1031, 0
    %1047 = vmatprep.subr.bf16.mxu0 0
    %1048 = vmatpush1.bf16.msra.mxu0 0
    %1049 = vmatprep.subr.bf16.mxu0 0
    %1050 = vmatpush1.bf16.msra.mxu0 0
    %1051 = vmatprep.subr.bf16.mxu0 0
    %1052 = vmatpush1.bf16.msra.mxu0 0
    %1053 = vmatprep.subr.bf16.mxu0 0
    %1054 = vmatpush1.bf16.msra.mxu0 0
    %1055 = vmatprep.subr.bf16.mxu0 0
    %1056 = vmatpush1.bf16.msra.mxu0 0
    %1057 = vmatprep.subr.bf16.mxu0 0
    %1058 = vmatpush1.bf16.msra.mxu0 0
    %1059 = vmatprep.subr.bf16.mxu0 0
    %1060 = vmatpush1.bf16.msra.mxu0 %v1041
    %1061 = vmatprep.subr.bf16.mxu0 0
    %1062 = vmatpush1.bf16.msra.mxu0 %v1040
    %1063 = vmatprep.subr.bf16.mxu0 0
    %1064 = vmatpush2.bf16.msra.mxu0 0
    %1065 = vmatprep.subr.bf16.mxu0 0
    %1066 = vmatpush2.bf16.msra.mxu0 0
    %1067 = vmatprep.subr.bf16.mxu0 0
    %1068 = vmatpush2.bf16.msra.mxu0 0
    %1069 = vmatprep.subr.bf16.mxu0 0
    %1070 = vmatpush2.bf16.msra.mxu0 0
    %1071 = vmatprep.subr.bf16.mxu0 0
    %1072 = vmatpush2.bf16.msra.mxu0 0
    %1073 = vmatprep.subr.bf16.mxu0 0
    %1074 = vmatpush2.bf16.msra.mxu0 0
    %1075 = vmatprep.subr.bf16.mxu0 0
    %1076 = vmatpush2.bf16.msra.mxu0 0
    %1077 = vmatprep.subr.bf16.mxu0 0
    %1078 = vmatpush2.bf16.msra.mxu0 0
    %1079 = vmatprep.mubr.bf16.mxu0 0
    %1080 = vmatmul.mubr.bf16.gmra.mxu0 %v1045
    %v1081 = vpop.f32.mrf.mxu0
    %v1082 = vadd.f32 0.0, %v1081
    %v1083 = vpop.f32.mrf.mxu0
    %v1084 = vpop.f32.mrf.mxu0
    %v1085 = vadd.f32 0.0, %v1084
    %v1086 = vpop.f32.mrf.mxu0
    %1087 = vdwg.mxu0
    %v1088 = vadd.f32 %v785, %v1082
    %v1089 = vadd.f32 %v786, %v1085
    %v1090 = vsel %vm299, %v1088, 0.0
    %1091 = vadd.xlane.f32.xlu0 %v1090
    %v1092 = vpop.xlane.xlu0 %1091
    %v1093 = vsel %vm299, %v1089, 0.0
    %1094 = vadd.xlane.f32.xlu0 %v1093
    %v1095 = vpop.xlane.xlu0 %1094
    %v1096 = vmul.f32 %v1092, %v750
    %v1097 = vmul.f32 %v1095, %v750
    %v1098 = vmul.f32 %v1088, %v1088
    %v1099 = vmul.f32 %v1089, %v1089
    %v1100 = vsel %vm299, %v1098, 0.0
    %1101 = vadd.xlane.f32.xlu0 %v1100
    %v1102 = vpop.xlane.xlu0 %1101
    %v1103 = vsel %vm299, %v1099, 0.0
    %1104 = vadd.xlane.f32.xlu0 %v1103
    %v1105 = vpop.xlane.xlu0 %1104
    %v1106 = vmul.f32 %v1102, %v750
    %v1107 = vmul.f32 %v1105, %v750
    %v1108 = vmul.f32 %v1096, %v1096
    %v1109 = vmul.f32 %v1097, %v1097
    %v1110 = vsub.f32 %v1106, %v1108
    %v1111 = vsub.f32 %v1107, %v1109
    %v1112 = vsub.f32 %v1088, %v1096
    %v1113 = vsub.f32 %v1089, %v1097
    %v1114 = vadd.f32 %v1110, 1e-05
    %v1115 = vadd.f32 %v1111, 1e-05
    %v1116 = vrsqrt.pop %v1114
    %v1117 = vrsqrt.pop %v1115
    %v1118 = vmul.f32 %v1112, %v1116
    %v1119 = vmul.f32 %v1113, %v1117
    %v1120 = vlaneseq
    %v1121 = vshrl.u32 %v1120, 7
    %v1122 = vsub.s32 4, %v1121
    %v1123 = vrot.slane %v370, %v1122
    %v1124 = vmul.f32 %v1118, %v1123
    %v1125 = vmul.f32 %v1119, %v1123
    %v1126 = vlaneseq
    %v1127 = vshrl.u32 %v1126, 7
    %v1128 = vsub.s32 5, %v1127
    %v1129 = vrot.slane %v370, %v1128
    %v1130 = vadd.f32 %v1124, %v1129
    %v1131 = vadd.f32 %v1125, %v1129
    %v1132 = vpack.c.bf16 %v1131, %v1130
    %v1133 = vld [vmem:[#allocation22] sm:$0xf]
    %v1134 = vld [vmem:[#allocation22 + $0x4] sm:$0xf]
    %v1135 = vld [vmem:[#allocation22 + $0x8] sm:$0xf]
    %v1136 = vld [vmem:[#allocation22 + $0xc] sm:$0xf]
    %v1137 = vlaneseq
    %v1138 = vshrl.u32 %v1137, 7
    %v1139 = vsub.s32 0, %v1138
    %v1140 = vrot.slane %v370, %v1139
    %v1145 = vunpack.c.l.b16 %v1133
    %v1146 = vunpack.c.l.b16 %v1134
    %v1147 = vunpack.c.l.b16 %v1135
    %v1148 = vunpack.c.l.b16 %v1136
    %v1149 = vpack.c.b16 %v1146, %v1145
    %v1150 = vpack.c.b16 %v1148, %v1147
    %v1154 = vsel %vm299, %v1132, 0
    %1156 = vmatprep.subr.bf16.mxu0 0
    %1157 = vmatpush1.bf16.msra.mxu0 0
    %1158 = vmatprep.subr.bf16.mxu0 0
    %1159 = vmatpush1.bf16.msra.mxu0 0
    %1160 = vmatprep.subr.bf16.mxu0 0
    %1161 = vmatpush1.bf16.msra.mxu0 0
    %1162 = vmatprep.subr.bf16.mxu0 0
    %1163 = vmatpush1.bf16.msra.mxu0 0
    %1164 = vmatprep.subr.bf16.mxu0 0
    %1165 = vmatpush1.bf16.msra.mxu0 0
    %1166 = vmatprep.subr.bf16.mxu0 0
    %1167 = vmatpush1.bf16.msra.mxu0 0
    %1168 = vmatprep.subr.bf16.mxu0 0
    %1169 = vmatpush1.bf16.msra.mxu0 %v1150
    %1170 = vmatprep.subr.bf16.mxu0 0
    %1171 = vmatpush1.bf16.msra.mxu0 %v1149
    %1172 = vmatprep.subr.bf16.mxu0 0
    %1173 = vmatpush2.bf16.msra.mxu0 0
    %1174 = vmatprep.subr.bf16.mxu0 0
    %1175 = vmatpush2.bf16.msra.mxu0 0
    %1176 = vmatprep.subr.bf16.mxu0 0
    %1177 = vmatpush2.bf16.msra.mxu0 0
    %1178 = vmatprep.subr.bf16.mxu0 0
    %1179 = vmatpush2.bf16.msra.mxu0 0
    %1180 = vmatprep.subr.bf16.mxu0 0
    %1181 = vmatpush2.bf16.msra.mxu0 0
    %1182 = vmatprep.subr.bf16.mxu0 0
    %1183 = vmatpush2.bf16.msra.mxu0 0
    %1184 = vmatprep.subr.bf16.mxu0 0
    %1185 = vmatpush2.bf16.msra.mxu0 0
    %1186 = vmatprep.subr.bf16.mxu0 0
    %1187 = vmatpush2.bf16.msra.mxu0 0
    %1188 = vmatprep.mubr.bf16.mxu0 0
    %1189 = vmatmul.mubr.bf16.gmra.mxu0 %v1154
    %v1190 = vpop.f32.mrf.mxu0
    %v1191 = vadd.f32 %v1140, %v1190
    %v1192 = vpop.f32.mrf.mxu0
    %v1193 = vpop.f32.mrf.mxu0
    %v1194 = vadd.f32 %v1140, %v1193
    %v1195 = vpop.f32.mrf.mxu0
    %1196 = vdwg.mxu0
    %v1197 = vmax.f32 %v1191, 0.0
    %v1198 = vmax.f32 %v1194, 0.0
    %v1199 = vpack.c.bf16 %v1198, %v1197
    %v1200 = vld [vmem:[%s15] sm:$0xf]
    %v1201 = vld [vmem:[%s15 + $0x4] sm:$0xf]
    %v1202 = vld [vmem:[%s15 + $0x8] sm:$0xf]
    %v1203 = vld [vmem:[%s15 + $0xc] sm:$0xf]
    %v1204 = vld [vmem:[%s15 + $0x10] sm:$0xf]
    %v1205 = vld [vmem:[%s15 + $0x14] sm:$0xf]
    %v1206 = vld [vmem:[%s15 + $0x18] sm:$0xf]
    %v1207 = vld [vmem:[%s15 + $0x1c] sm:$0xf]
    %v1208 = vlaneseq
    %v1209 = vshrl.u32 %v1208, 7
    %v1210 = vsub.s32 1, %v1209
    %v1211 = vrot.slane %v370, %v1210
    %v1220 = vunpack.c.l.b16 %v1200
    %v1221 = vunpack.c.l.b16 %v1201
    %v1222 = vunpack.c.l.b16 %v1202
    %v1223 = vunpack.c.l.b16 %v1203
    %v1224 = vunpack.c.l.b16 %v1204
    %v1225 = vunpack.c.l.b16 %v1205
    %v1226 = vunpack.c.l.b16 %v1206
    %v1227 = vunpack.c.l.b16 %v1207
    %v1228 = vpack.c.b16 %v1221, %v1220
    %v1229 = vpack.c.b16 %v1223, %v1222
    %v1230 = vpack.c.b16 %v1225, %v1224
    %v1231 = vpack.c.b16 %v1227, %v1226
    %v1237 = vsel %vm506, %v1199, 0
    %1239 = vmatprep.subr.bf16.mxu0 0
    %1240 = vmatpush1.bf16.msra.mxu0 0
    %1241 = vmatprep.subr.bf16.mxu0 0
    %1242 = vmatpush1.bf16.msra.mxu0 0
    %1243 = vmatprep.subr.bf16.mxu0 0
    %1244 = vmatpush1.bf16.msra.mxu0 0
    %1245 = vmatprep.subr.bf16.mxu0 0
    %1246 = vmatpush1.bf16.msra.mxu0 0
    %1247 = vmatprep.subr.bf16.mxu0 0
    %1248 = vmatpush1.bf16.msra.mxu0 %v1231
    %1249 = vmatprep.subr.bf16.mxu0 0
    %1250 = vmatpush1.bf16.msra.mxu0 %v1230
    %1251 = vmatprep.subr.bf16.mxu0 0
    %1252 = vmatpush1.bf16.msra.mxu0 %v1229
    %1253 = vmatprep.subr.bf16.mxu0 0
    %1254 = vmatpush1.bf16.msra.mxu0 %v1228
    %1255 = vmatprep.subr.bf16.mxu0 0
    %1256 = vmatpush2.bf16.msra.mxu0 0
    %1257 = vmatprep.subr.bf16.mxu0 0
    %1258 = vmatpush2.bf16.msra.mxu0 0
    %1259 = vmatprep.subr.bf16.mxu0 0
    %1260 = vmatpush2.bf16.msra.mxu0 0
    %1261 = vmatprep.subr.bf16.mxu0 0
    %1262 = vmatpush2.bf16.msra.mxu0 0
    %1263 = vmatprep.subr.bf16.mxu0 0
    %1264 = vmatpush2.bf16.msra.mxu0 0
    %1265 = vmatprep.subr.bf16.mxu0 0
    %1266 = vmatpush2.bf16.msra.mxu0 0
    %1267 = vmatprep.subr.bf16.mxu0 0
    %1268 = vmatpush2.bf16.msra.mxu0 0
    %1269 = vmatprep.subr.bf16.mxu0 0
    %1270 = vmatpush2.bf16.msra.mxu0 0
    %1271 = vmatprep.mubr.bf16.mxu0 0
    %1272 = vmatmul.mubr.bf16.gmra.mxu0 %v1237
    %v1273 = vpop.f32.mrf.mxu0
    %v1274 = vadd.f32 %v1211, %v1273
    %v1275 = vpop.f32.mrf.mxu0
    %v1276 = vpop.f32.mrf.mxu0
    %v1277 = vadd.f32 %v1211, %v1276
    %v1278 = vpop.f32.mrf.mxu0
    %1279 = vdwg.mxu0
    %v1280 = vadd.f32 %v1130, %v1274
    %v1281 = vadd.f32 %v1131, %v1277
    %v1282 = vsel %vm299, %v1280, 0.0
    %1283 = vadd.xlane.f32.xlu0 %v1282
    %v1284 = vpop.xlane.xlu0 %1283
    %v1285 = vsel %vm299, %v1281, 0.0
    %1286 = vadd.xlane.f32.xlu0 %v1285
    %v1287 = vpop.xlane.xlu0 %1286
    %v1288 = vmul.f32 %v1284, %v750
    %v1289 = vmul.f32 %v1287, %v750
    %v1290 = vmul.f32 %v1280, %v1280
    %v1291 = vmul.f32 %v1281, %v1281
    %v1292 = vsel %vm299, %v1290, 0.0
    %1293 = vadd.xlane.f32.xlu0 %v1292
    %v1294 = vpop.xlane.xlu0 %1293
    %v1295 = vsel %vm299, %v1291, 0.0
    %1296 = vadd.xlane.f32.xlu0 %v1295
    %v1297 = vpop.xlane.xlu0 %1296
    %v1298 = vmul.f32 %v1294, %v750
    %v1299 = vmul.f32 %v1297, %v750
    %v1300 = vmul.f32 %v1288, %v1288
    %v1301 = vmul.f32 %v1289, %v1289
    %v1302 = vsub.f32 %v1298, %v1300
    %v1303 = vsub.f32 %v1299, %v1301
    %v1304 = vsub.f32 %v1280, %v1288
    %v1305 = vsub.f32 %v1281, %v1289
    %v1306 = vadd.f32 %v1302, 1e-05
    %v1307 = vadd.f32 %v1303, 1e-05
    %v1308 = vrsqrt.pop %v1306
    %v1309 = vrsqrt.pop %v1307
    %v1310 = vmul.f32 %v1304, %v1308
    %v1311 = vmul.f32 %v1305, %v1309
    %v1312 = vlaneseq
    %v1313 = vshrl.u32 %v1312, 7
    %v1314 = vsub.s32 6, %v1313
    %v1315 = vrot.slane %v370, %v1314
    %v1316 = vmul.f32 %v1310, %v1315
    %v1317 = vmul.f32 %v1311, %v1315
    %v1318 = vlaneseq
    %v1319 = vshrl.u32 %v1318, 7
    %v1320 = vsub.s32 7, %v1319
    %v1321 = vrot.slane %v370, %v1320
    %v1322 = vadd.f32 %v1316, %v1321
    %v1323 = vadd.f32 %v1317, %v1321
    %s1324 = scalar_lea.vmem %s16, 8
    %v1325 = vld [vmem:[%s1324] sm:$0xff]
    %v1326 = vpack.c.bf16 %v1323, %v1322
    %s1327 = scalar_lea.vmem [#allocation13], 16
    %v1328 = vld [vmem:[%s1327] sm:$0xf]
    %v1329 = vld [vmem:[%s1327 + $0x4] sm:$0xf]
    %v1330 = vld [vmem:[%s1327 + $0x8] sm:$0xf]
    %v1331 = vld [vmem:[%s1327 + $0xc] sm:$0xf]
    %v1336 = vunpack.c.l.b16 %v1328
    %v1337 = vunpack.c.l.b16 %v1329
    %v1338 = vunpack.c.l.b16 %v1330
    %v1339 = vunpack.c.l.b16 %v1331
    %v1340 = vpack.c.b16 %v1337, %v1336
    %v1341 = vpack.c.b16 %v1339, %v1338
    %v1345 = vsel %vm299, %v1326, 0
    %1347 = vmatprep.subr.bf16.mxu0 0
    %1348 = vmatpush1.bf16.msra.mxu0 0
    %1349 = vmatprep.subr.bf16.mxu0 0
    %1350 = vmatpush1.bf16.msra.mxu0 0
    %1351 = vmatprep.subr.bf16.mxu0 0
    %1352 = vmatpush1.bf16.msra.mxu0 0
    %1353 = vmatprep.subr.bf16.mxu0 0
    %1354 = vmatpush1.bf16.msra.mxu0 0
    %1355 = vmatprep.subr.bf16.mxu0 0
    %1356 = vmatpush1.bf16.msra.mxu0 0
    %1357 = vmatprep.subr.bf16.mxu0 0
    %1358 = vmatpush1.bf16.msra.mxu0 0
    %1359 = vmatprep.subr.bf16.mxu0 0
    %1360 = vmatpush1.bf16.msra.mxu0 %v1341
    %1361 = vmatprep.subr.bf16.mxu0 0
    %1362 = vmatpush1.bf16.msra.mxu0 %v1340
    %1363 = vmatprep.subr.bf16.mxu0 0
    %1364 = vmatpush2.bf16.msra.mxu0 0
    %1365 = vmatprep.subr.bf16.mxu0 0
    %1366 = vmatpush2.bf16.msra.mxu0 0
    %1367 = vmatprep.subr.bf16.mxu0 0
    %1368 = vmatpush2.bf16.msra.mxu0 0
    %1369 = vmatprep.subr.bf16.mxu0 0
    %1370 = vmatpush2.bf16.msra.mxu0 0
    %1371 = vmatprep.subr.bf16.mxu0 0
    %1372 = vmatpush2.bf16.msra.mxu0 0
    %1373 = vmatprep.subr.bf16.mxu0 0
    %1374 = vmatpush2.bf16.msra.mxu0 0
    %1375 = vmatprep.subr.bf16.mxu0 0
    %1376 = vmatpush2.bf16.msra.mxu0 0
    %1377 = vmatprep.subr.bf16.mxu0 0
    %1378 = vmatpush2.bf16.msra.mxu0 0
    %1379 = vmatprep.mubr.bf16.mxu0 0
    %1380 = vmatmul.mubr.bf16.gmra.mxu0 %v1345
    %v1381 = vpop.f32.mrf.mxu0
    %v1382 = vadd.f32 0.0, %v1381
    %v1383 = vpop.f32.mrf.mxu0
    %v1384 = vpop.f32.mrf.mxu0
    %v1385 = vadd.f32 0.0, %v1384
    %v1386 = vpop.f32.mrf.mxu0
    %1387 = vdwg.mxu0
    %v1388 = vpack.c.bf16 %v1385, %v1382
    %s1389 = scalar_lea.vmem [#allocation14], 16
    %v1390 = vld [vmem:[%s1389] sm:$0xf]
    %v1391 = vld [vmem:[%s1389 + $0x4] sm:$0xf]
    %v1392 = vld [vmem:[%s1389 + $0x8] sm:$0xf]
    %v1393 = vld [vmem:[%s1389 + $0xc] sm:$0xf]
    %v1398 = vunpack.c.l.b16 %v1390
    %v1399 = vunpack.c.l.b16 %v1391
    %v1400 = vunpack.c.l.b16 %v1392
    %v1401 = vunpack.c.l.b16 %v1393
    %v1402 = vpack.c.b16 %v1399, %v1398
    %v1403 = vpack.c.b16 %v1401, %v1400
    %1406 = vmatprep.subr.bf16.mxu0 0
    %1407 = vmatpush1.bf16.msra.mxu0 0
    %1408 = vmatprep.subr.bf16.mxu0 0
    %1409 = vmatpush1.bf16.msra.mxu0 0
    %1410 = vmatprep.subr.bf16.mxu0 0
    %1411 = vmatpush1.bf16.msra.mxu0 0
    %1412 = vmatprep.subr.bf16.mxu0 0
    %1413 = vmatpush1.bf16.msra.mxu0 0
    %1414 = vmatprep.subr.bf16.mxu0 0
    %1415 = vmatpush1.bf16.msra.mxu0 0
    %1416 = vmatprep.subr.bf16.mxu0 0
    %1417 = vmatpush1.bf16.msra.mxu0 0
    %1418 = vmatprep.subr.bf16.mxu0 0
    %1419 = vmatpush1.bf16.msra.mxu0 %v1403
    %1420 = vmatprep.subr.bf16.mxu0 0
    %1421 = vmatpush1.bf16.msra.mxu0 %v1402
    %1422 = vmatprep.subr.bf16.mxu0 0
    %1423 = vmatpush2.bf16.msra.mxu0 0
    %1424 = vmatprep.subr.bf16.mxu0 0
    %1425 = vmatpush2.bf16.msra.mxu0 0
    %1426 = vmatprep.subr.bf16.mxu0 0
    %1427 = vmatpush2.bf16.msra.mxu0 0
    %1428 = vmatprep.subr.bf16.mxu0 0
    %1429 = vmatpush2.bf16.msra.mxu0 0
    %1430 = vmatprep.subr.bf16.mxu0 0
    %1431 = vmatpush2.bf16.msra.mxu0 0
    %1432 = vmatprep.subr.bf16.mxu0 0
    %1433 = vmatpush2.bf16.msra.mxu0 0
    %1434 = vmatprep.subr.bf16.mxu0 0
    %1435 = vmatpush2.bf16.msra.mxu0 0
    %1436 = vmatprep.subr.bf16.mxu0 0
    %1437 = vmatpush2.bf16.msra.mxu0 0
    %1438 = vmatprep.mubr.bf16.mxu0 0
    %1439 = vmatmul.mubr.bf16.gmra.mxu0 %v1345
    %v1440 = vpop.f32.mrf.mxu0
    %v1441 = vadd.f32 0.0, %v1440
    %v1442 = vpop.f32.mrf.mxu0
    %v1443 = vpop.f32.mrf.mxu0
    %v1444 = vadd.f32 0.0, %v1443
    %v1445 = vpop.f32.mrf.mxu0
    %1446 = vdwg.mxu0
    %v1447 = vmul.f32 %v1441, %v240
    %v1448 = vmul.f32 %v1444, %v241
    %v1449 = vmul.f32 %v1441, %v242
    %v1450 = vmul.f32 %v1444, %v243
    %v1451 = vmul.f32 %v1441, %v244
    %v1452 = vmul.f32 %v1444, %v245
    %v1453 = vmul.f32 %v1441, %v246
    %v1454 = vmul.f32 %v1444, %v247
    %v1455 = vpack.c.bf16 %v1448, %v1447
    %v1456 = vpack.c.bf16 %v1450, %v1449
    %v1457 = vpack.c.bf16 %v1452, %v1451
    %v1458 = vpack.c.bf16 %v1454, %v1453
    %s1459 = scalar_lea.vmem [#allocation16], 16
    %v1460 = vld [vmem:[%s1459] sm:$0xf]
    %v1461 = vld [vmem:[%s1459 + $0x4] sm:$0xf]
    %v1462 = vld [vmem:[%s1459 + $0x8] sm:$0xf]
    %v1463 = vld [vmem:[%s1459 + $0xc] sm:$0xf]
    %v1465 = vsel %vm506, %v1388, 0
    %v1468 = vsel %vm506, %v1455, 0
    %v1471 = vsel %vm506, %v1456, 0
    %v1474 = vsel %vm506, %v1457, 0
    %v1477 = vsel %vm506, %v1458, 0
    %1479 = vmatprep.subr.bf16.mxu0 0
    %1480 = vmatpush1.bf16.xpose.msra.mxu0 0
    %1481 = vmatprep.subr.bf16.mxu0 0
    %1482 = vmatpush1.bf16.xpose.msra.mxu0 0
    %1483 = vmatprep.subr.bf16.mxu0 0
    %1484 = vmatpush1.bf16.xpose.msra.mxu0 0
    %1485 = vmatprep.subr.bf16.mxu0 0
    %1486 = vmatpush1.bf16.xpose.msra.mxu0 0
    %1487 = vmatprep.subr.bf16.mxu0 0
    %1488 = vmatpush1.bf16.xpose.msra.mxu0 %v1477
    %1489 = vmatprep.subr.bf16.mxu0 0
    %1490 = vmatpush1.bf16.xpose.msra.mxu0 %v1474
    %1491 = vmatprep.subr.bf16.mxu0 0
    %1492 = vmatpush1.bf16.xpose.msra.mxu0 %v1471
    %1493 = vmatprep.subr.bf16.mxu0 0
    %1494 = vmatpush1.bf16.xpose.msra.mxu0 %v1468
    %1495 = vmatprep.subr.bf16.mxu0 0
    %1496 = vmatpush2.bf16.xpose.msra.mxu0 0
    %1497 = vmatprep.subr.bf16.mxu0 0
    %1498 = vmatpush2.bf16.xpose.msra.mxu0 0
    %1499 = vmatprep.subr.bf16.mxu0 0
    %1500 = vmatpush2.bf16.xpose.msra.mxu0 0
    %1501 = vmatprep.subr.bf16.mxu0 0
    %1502 = vmatpush2.bf16.xpose.msra.mxu0 0
    %1503 = vmatprep.subr.bf16.mxu0 0
    %1504 = vmatpush2.bf16.xpose.msra.mxu0 0
    %1505 = vmatprep.subr.bf16.mxu0 0
    %1506 = vmatpush2.bf16.xpose.msra.mxu0 0
    %1507 = vmatprep.subr.bf16.mxu0 0
    %1508 = vmatpush2.bf16.xpose.msra.mxu0 0
    %1509 = vmatprep.subr.bf16.mxu0 0
    %1510 = vmatpush2.bf16.xpose.msra.mxu0 0
    %1511 = vmatprep.mubr.bf16.mxu0 0
    %1512 = vmatmul.mubr.bf16.gmra.mxu0 %v1465
    %v1513 = vpop.f32.mrf.mxu0
    %v1514 = vadd.f32 %v236, %v1513
    %v1515 = vpop.f32.mrf.mxu0
    %v1516 = vpop.f32.mrf.mxu0
    %v1517 = vadd.f32 %v237, %v1516
    %v1518 = vpop.f32.mrf.mxu0
    %1519 = vdwg.mxu0
    %v1520 = vmul.f32 %v1514, 1.442695
    %v1521 = vpow.pop %v1520
    %v1522 = vmul.f32 %v1517, 1.442695
    %v1523 = vpow.pop %v1522
    %v1524 = vpack.c.bf16 %v1523, %v1521
    %v1526 = vsel %vm506, %v1524, 0
    %1528 = vmatprep.subr.bf16.mxu0 0
    %1529 = vmatpush1.bf16.msra.mxu0 0
    %1530 = vmatprep.subr.bf16.mxu0 0
    %1531 = vmatpush1.bf16.msra.mxu0 0
    %1532 = vmatprep.subr.bf16.mxu0 0
    %1533 = vmatpush1.bf16.msra.mxu0 0
    %1534 = vmatprep.subr.bf16.mxu0 0
    %1535 = vmatpush1.bf16.msra.mxu0 0
    %1536 = vmatprep.subr.bf16.mxu0 0
    %1537 = vmatpush1.bf16.msra.mxu0 %v587
    %1538 = vmatprep.subr.bf16.mxu0 0
    %1539 = vmatpush1.bf16.msra.mxu0 %v586
    %1540 = vmatprep.subr.bf16.mxu0 0
    %1541 = vmatpush1.bf16.msra.mxu0 %v585
    %1542 = vmatprep.subr.bf16.mxu0 0
    %1543 = vmatpush1.bf16.msra.mxu0 %v584
    %1544 = vmatprep.subr.bf16.mxu0 0
    %1545 = vmatpush2.bf16.msra.mxu0 0
    %1546 = vmatprep.subr.bf16.mxu0 0
    %1547 = vmatpush2.bf16.msra.mxu0 0
    %1548 = vmatprep.subr.bf16.mxu0 0
    %1549 = vmatpush2.bf16.msra.mxu0 0
    %1550 = vmatprep.subr.bf16.mxu0 0
    %1551 = vmatpush2.bf16.msra.mxu0 0
    %1552 = vmatprep.subr.bf16.mxu0 0
    %1553 = vmatpush2.bf16.msra.mxu0 0
    %1554 = vmatprep.subr.bf16.mxu0 0
    %1555 = vmatpush2.bf16.msra.mxu0 0
    %1556 = vmatprep.subr.bf16.mxu0 0
    %1557 = vmatpush2.bf16.msra.mxu0 0
    %1558 = vmatprep.subr.bf16.mxu0 0
    %1559 = vmatpush2.bf16.msra.mxu0 0
    %1560 = vmatprep.mubr.bf16.mxu0 0
    %1561 = vmatmul.mubr.bf16.gmra.mxu0 %v1526
    %v1562 = vpop.f32.mrf.mxu0
    %v1563 = vadd.f32 0.0, %v1562
    %v1564 = vpop.f32.mrf.mxu0
    %v1565 = vpop.f32.mrf.mxu0
    %v1566 = vadd.f32 0.0, %v1565
    %v1567 = vpop.f32.mrf.mxu0
    %1568 = vdwg.mxu0
    %v1569 = vrcp.pop %v1563
    %v1570 = vrcp.pop %v1566
    %v1571 = vmul.f32 %v1521, %v1569
    %v1572 = vmul.f32 %v1523, %v1570
    %v1573 = vpack.c.bf16 %v1572, %v1571
    %v1575 = vsel %vm506, %v1573, 0
    %1577 = vmatprep.subr.bf16.mxu0 0
    %1578 = vmatpush1.bf16.msra.mxu0 0
    %1579 = vmatprep.subr.bf16.mxu0 0
    %1580 = vmatpush1.bf16.msra.mxu0 0
    %1581 = vmatprep.subr.bf16.mxu0 0
    %1582 = vmatpush1.bf16.msra.mxu0 0
    %1583 = vmatprep.subr.bf16.mxu0 0
    %1584 = vmatpush1.bf16.msra.mxu0 0
    %1585 = vmatprep.subr.bf16.mxu0 0
    %1586 = vmatpush1.bf16.msra.mxu0 %v1458
    %1587 = vmatprep.subr.bf16.mxu0 0
    %1588 = vmatpush1.bf16.msra.mxu0 %v1457
    %1589 = vmatprep.subr.bf16.mxu0 0
    %1590 = vmatpush1.bf16.msra.mxu0 %v1456
    %1591 = vmatprep.subr.bf16.mxu0 0
    %1592 = vmatpush1.bf16.msra.mxu0 %v1455
    %1593 = vmatprep.subr.bf16.mxu0 0
    %1594 = vmatpush2.bf16.msra.mxu0 0
    %1595 = vmatprep.subr.bf16.mxu0 0
    %1596 = vmatpush2.bf16.msra.mxu0 0
    %1597 = vmatprep.subr.bf16.mxu0 0
    %1598 = vmatpush2.bf16.msra.mxu0 0
    %1599 = vmatprep.subr.bf16.mxu0 0
    %1600 = vmatpush2.bf16.msra.mxu0 0
    %1601 = vmatprep.subr.bf16.mxu0 0
    %1602 = vmatpush2.bf16.msra.mxu0 0
    %1603 = vmatprep.subr.bf16.mxu0 0
    %1604 = vmatpush2.bf16.msra.mxu0 0
    %1605 = vmatprep.subr.bf16.mxu0 0
    %1606 = vmatpush2.bf16.msra.mxu0 0
    %1607 = vmatprep.subr.bf16.mxu0 0
    %1608 = vmatpush2.bf16.msra.mxu0 0
    %1609 = vmatprep.mubr.bf16.mxu0 0
    %1610 = vmatmul.mubr.bf16.gmra.mxu0 %v1575
    %v1611 = vpop.f32.mrf.mxu0
    %v1612 = vadd.f32 0.0, %v1611
    %v1613 = vpop.f32.mrf.mxu0
    %v1614 = vpop.f32.mrf.mxu0
    %v1615 = vadd.f32 0.0, %v1614
    %v1616 = vpop.f32.mrf.mxu0
    %1617 = vdwg.mxu0
    %v1618 = vpack.c.bf16 %v1615, %v1612
    %v1623 = vunpack.c.l.b16 %v1460
    %v1624 = vunpack.c.l.b16 %v1461
    %v1625 = vunpack.c.l.b16 %v1462
    %v1626 = vunpack.c.l.b16 %v1463
    %v1627 = vpack.c.b16 %v1624, %v1623
    %v1628 = vpack.c.b16 %v1626, %v1625
    %v1632 = vsel %vm299, %v1618, 0
    %1634 = vmatprep.subr.bf16.mxu0 0
    %1635 = vmatpush1.bf16.msra.mxu0 0
    %1636 = vmatprep.subr.bf16.mxu0 0
    %1637 = vmatpush1.bf16.msra.mxu0 0
    %1638 = vmatprep.subr.bf16.mxu0 0
    %1639 = vmatpush1.bf16.msra.mxu0 0
    %1640 = vmatprep.subr.bf16.mxu0 0
    %1641 = vmatpush1.bf16.msra.mxu0 0
    %1642 = vmatprep.subr.bf16.mxu0 0
    %1643 = vmatpush1.bf16.msra.mxu0 0
    %1644 = vmatprep.subr.bf16.mxu0 0
    %1645 = vmatpush1.bf16.msra.mxu0 0
    %1646 = vmatprep.subr.bf16.mxu0 0
    %1647 = vmatpush1.bf16.msra.mxu0 %v1628
    %1648 = vmatprep.subr.bf16.mxu0 0
    %1649 = vmatpush1.bf16.msra.mxu0 %v1627
    %1650 = vmatprep.subr.bf16.mxu0 0
    %1651 = vmatpush2.bf16.msra.mxu0 0
    %1652 = vmatprep.subr.bf16.mxu0 0
    %1653 = vmatpush2.bf16.msra.mxu0 0
    %1654 = vmatprep.subr.bf16.mxu0 0
    %1655 = vmatpush2.bf16.msra.mxu0 0
    %1656 = vmatprep.subr.bf16.mxu0 0
    %1657 = vmatpush2.bf16.msra.mxu0 0
    %1658 = vmatprep.subr.bf16.mxu0 0
    %1659 = vmatpush2.bf16.msra.mxu0 0
    %1660 = vmatprep.subr.bf16.mxu0 0
    %1661 = vmatpush2.bf16.msra.mxu0 0
    %1662 = vmatprep.subr.bf16.mxu0 0
    %1663 = vmatpush2.bf16.msra.mxu0 0
    %1664 = vmatprep.subr.bf16.mxu0 0
    %1665 = vmatpush2.bf16.msra.mxu0 0
    %1666 = vmatprep.mubr.bf16.mxu0 0
    %1667 = vmatmul.mubr.bf16.gmra.mxu0 %v1632
    %v1668 = vpop.f32.mrf.mxu0
    %v1669 = vadd.f32 0.0, %v1668
    %v1670 = vpop.f32.mrf.mxu0
    %v1671 = vpop.f32.mrf.mxu0
    %v1672 = vadd.f32 0.0, %v1671
    %v1673 = vpop.f32.mrf.mxu0
    %1674 = vdwg.mxu0
    %v1675 = vadd.f32 %v1322, %v1669
    %v1676 = vadd.f32 %v1323, %v1672
    %v1677 = vsel %vm299, %v1675, 0.0
    %1678 = vadd.xlane.f32.xlu0 %v1677
    %v1679 = vpop.xlane.xlu0 %1678
    %v1680 = vsel %vm299, %v1676, 0.0
    %1681 = vadd.xlane.f32.xlu0 %v1680
    %v1682 = vpop.xlane.xlu0 %1681
    %v1683 = vmul.f32 %v1679, %v750
    %v1684 = vmul.f32 %v1682, %v750
    %v1685 = vmul.f32 %v1675, %v1675
    %v1686 = vmul.f32 %v1676, %v1676
    %v1687 = vsel %vm299, %v1685, 0.0
    %1688 = vadd.xlane.f32.xlu0 %v1687
    %v1689 = vpop.xlane.xlu0 %1688
    %v1690 = vsel %vm299, %v1686, 0.0
    %1691 = vadd.xlane.f32.xlu0 %v1690
    %v1692 = vpop.xlane.xlu0 %1691
    %v1693 = vmul.f32 %v1689, %v750
    %v1694 = vmul.f32 %v1692, %v750
    %v1695 = vmul.f32 %v1683, %v1683
    %v1696 = vmul.f32 %v1684, %v1684
    %v1697 = vsub.f32 %v1693, %v1695
    %v1698 = vsub.f32 %v1694, %v1696
    %v1699 = vsub.f32 %v1675, %v1683
    %v1700 = vsub.f32 %v1676, %v1684
    %v1701 = vadd.f32 %v1697, 1e-05
    %v1702 = vadd.f32 %v1698, 1e-05
    %v1703 = vrsqrt.pop %v1701
    %v1704 = vrsqrt.pop %v1702
    %v1705 = vmul.f32 %v1699, %v1703
    %v1706 = vmul.f32 %v1700, %v1704
    %v1707 = vlaneseq
    %v1708 = vshrl.u32 %v1707, 7
    %v1709 = vsub.s32 2, %v1708
    %v1710 = vrot.slane %v1325, %v1709
    %v1711 = vmul.f32 %v1705, %v1710
    %v1712 = vmul.f32 %v1706, %v1710
    %v1713 = vlaneseq
    %v1714 = vshrl.u32 %v1713, 7
    %v1715 = vsub.s32 3, %v1714
    %v1716 = vrot.slane %v1325, %v1715
    %v1717 = vadd.f32 %v1711, %v1716
    %v1718 = vadd.f32 %v1712, %v1716
    %v1719 = vpack.c.bf16 %v1718, %v1717
    %s1720 = scalar_lea.vmem [#allocation17], 16
    %v1721 = vld [vmem:[%s1720] sm:$0xf]
    %v1722 = vld [vmem:[%s1720 + $0x4] sm:$0xf]
    %v1723 = vld [vmem:[%s1720 + $0x8] sm:$0xf]
    %v1724 = vld [vmem:[%s1720 + $0xc] sm:$0xf]
    %v1729 = vunpack.c.l.b16 %v1721
    %v1730 = vunpack.c.l.b16 %v1722
    %v1731 = vunpack.c.l.b16 %v1723
    %v1732 = vunpack.c.l.b16 %v1724
    %v1733 = vpack.c.b16 %v1730, %v1729
    %v1734 = vpack.c.b16 %v1732, %v1731
    %v1738 = vsel %vm299, %v1719, 0
    %1740 = vmatprep.subr.bf16.mxu0 0
    %1741 = vmatpush1.bf16.msra.mxu0 0
    %1742 = vmatprep.subr.bf16.mxu0 0
    %1743 = vmatpush1.bf16.msra.mxu0 0
    %1744 = vmatprep.subr.bf16.mxu0 0
    %1745 = vmatpush1.bf16.msra.mxu0 0
    %1746 = vmatprep.subr.bf16.mxu0 0
    %1747 = vmatpush1.bf16.msra.mxu0 0
    %1748 = vmatprep.subr.bf16.mxu0 0
    %1749 = vmatpush1.bf16.msra.mxu0 0
    %1750 = vmatprep.subr.bf16.mxu0 0
    %1751 = vmatpush1.bf16.msra.mxu0 0
    %1752 = vmatprep.subr.bf16.mxu0 0
    %1753 = vmatpush1.bf16.msra.mxu0 %v1734
    %1754 = vmatprep.subr.bf16.mxu0 0
    %1755 = vmatpush1.bf16.msra.mxu0 %v1733
    %1756 = vmatprep.subr.bf16.mxu0 0
    %1757 = vmatpush2.bf16.msra.mxu0 0
    %1758 = vmatprep.subr.bf16.mxu0 0
    %1759 = vmatpush2.bf16.msra.mxu0 0
    %1760 = vmatprep.subr.bf16.mxu0 0
    %1761 = vmatpush2.bf16.msra.mxu0 0
    %1762 = vmatprep.subr.bf16.mxu0 0
    %1763 = vmatpush2.bf16.msra.mxu0 0
    %1764 = vmatprep.subr.bf16.mxu0 0
    %1765 = vmatpush2.bf16.msra.mxu0 0
    %1766 = vmatprep.subr.bf16.mxu0 0
    %1767 = vmatpush2.bf16.msra.mxu0 0
    %1768 = vmatprep.subr.bf16.mxu0 0
    %1769 = vmatpush2.bf16.msra.mxu0 0
    %1770 = vmatprep.subr.bf16.mxu0 0
    %1771 = vmatpush2.bf16.msra.mxu0 0
    %1772 = vmatprep.mubr.bf16.mxu0 0
    %1773 = vmatmul.mubr.bf16.gmra.mxu0 %v1738
    %v1774 = vpop.f32.mrf.mxu0
    %v1775 = vadd.f32 0.0, %v1774
    %v1776 = vpop.f32.mrf.mxu0
    %v1777 = vpop.f32.mrf.mxu0
    %v1778 = vadd.f32 0.0, %v1777
    %v1779 = vpop.f32.mrf.mxu0
    %1780 = vdwg.mxu0
    %v1781 = vpack.c.bf16 %v1778, %v1775
    %s1782 = scalar_lea.vmem [#allocation20], 16
    %v1783 = vld [vmem:[%s1782] sm:$0xf]
    %v1784 = vld [vmem:[%s1782 + $0x4] sm:$0xf]
    %v1785 = vld [vmem:[%s1782 + $0x8] sm:$0xf]
    %v1786 = vld [vmem:[%s1782 + $0xc] sm:$0xf]
    %v1788 = vsel %vm506, %v1781, 0
    %v1791 = vsel %vm506, %v366, 0
    %v1794 = vsel %vm506, %v367, 0
    %v1797 = vsel %vm506, %v368, 0
    %v1800 = vsel %vm506, %v369, 0
    %1802 = vmatprep.subr.bf16.mxu0 0
    %1803 = vmatpush1.bf16.xpose.msra.mxu0 0
    %1804 = vmatprep.subr.bf16.mxu0 0
    %1805 = vmatpush1.bf16.xpose.msra.mxu0 0
    %1806 = vmatprep.subr.bf16.mxu0 0
    %1807 = vmatpush1.bf16.xpose.msra.mxu0 0
    %1808 = vmatprep.subr.bf16.mxu0 0
    %1809 = vmatpush1.bf16.xpose.msra.mxu0 0
    %1810 = vmatprep.subr.bf16.mxu0 0
    %1811 = vmatpush1.bf16.xpose.msra.mxu0 %v1800
    %1812 = vmatprep.subr.bf16.mxu0 0
    %1813 = vmatpush1.bf16.xpose.msra.mxu0 %v1797
    %1814 = vmatprep.subr.bf16.mxu0 0
    %1815 = vmatpush1.bf16.xpose.msra.mxu0 %v1794
    %1816 = vmatprep.subr.bf16.mxu0 0
    %1817 = vmatpush1.bf16.xpose.msra.mxu0 %v1791
    %1818 = vmatprep.subr.bf16.mxu0 0
    %1819 = vmatpush2.bf16.xpose.msra.mxu0 0
    %1820 = vmatprep.subr.bf16.mxu0 0
    %1821 = vmatpush2.bf16.xpose.msra.mxu0 0
    %1822 = vmatprep.subr.bf16.mxu0 0
    %1823 = vmatpush2.bf16.xpose.msra.mxu0 0
    %1824 = vmatprep.subr.bf16.mxu0 0
    %1825 = vmatpush2.bf16.xpose.msra.mxu0 0
    %1826 = vmatprep.subr.bf16.mxu0 0
    %1827 = vmatpush2.bf16.xpose.msra.mxu0 0
    %1828 = vmatprep.subr.bf16.mxu0 0
    %1829 = vmatpush2.bf16.xpose.msra.mxu0 0
    %1830 = vmatprep.subr.bf16.mxu0 0
    %1831 = vmatpush2.bf16.xpose.msra.mxu0 0
    %1832 = vmatprep.subr.bf16.mxu0 0
    %1833 = vmatpush2.bf16.xpose.msra.mxu0 0
    %1834 = vmatprep.mubr.bf16.mxu0 0
    %1835 = vmatmul.mubr.bf16.gmra.mxu0 %v1788
    %v1836 = vpop.f32.mrf.mxu0
    %v1837 = vadd.f32 %v238, %v1836
    %v1838 = vpop.f32.mrf.mxu0
    %v1839 = vpop.f32.mrf.mxu0
    %v1840 = vadd.f32 %v239, %v1839
    %v1841 = vpop.f32.mrf.mxu0
    %1842 = vdwg.mxu0
    %v1843 = vmul.f32 %v1837, 1.442695
    %v1844 = vpow.pop %v1843
    %v1845 = vmul.f32 %v1840, 1.442695
    %v1846 = vpow.pop %v1845
    %v1847 = vpack.c.bf16 %v1846, %v1844
    %v1849 = vsel %vm506, %v1847, 0
    %1851 = vmatprep.subr.bf16.mxu0 0
    %1852 = vmatpush1.bf16.msra.mxu0 0
    %1853 = vmatprep.subr.bf16.mxu0 0
    %1854 = vmatpush1.bf16.msra.mxu0 0
    %1855 = vmatprep.subr.bf16.mxu0 0
    %1856 = vmatpush1.bf16.msra.mxu0 0
    %1857 = vmatprep.subr.bf16.mxu0 0
    %1858 = vmatpush1.bf16.msra.mxu0 0
    %1859 = vmatprep.subr.bf16.mxu0 0
    %1860 = vmatpush1.bf16.msra.mxu0 %v933
    %1861 = vmatprep.subr.bf16.mxu0 0
    %1862 = vmatpush1.bf16.msra.mxu0 %v932
    %1863 = vmatprep.subr.bf16.mxu0 0
    %1864 = vmatpush1.bf16.msra.mxu0 %v931
    %1865 = vmatprep.subr.bf16.mxu0 0
    %1866 = vmatpush1.bf16.msra.mxu0 %v930
    %1867 = vmatprep.subr.bf16.mxu0 0
    %1868 = vmatpush2.bf16.msra.mxu0 0
    %1869 = vmatprep.subr.bf16.mxu0 0
    %1870 = vmatpush2.bf16.msra.mxu0 0
    %1871 = vmatprep.subr.bf16.mxu0 0
    %1872 = vmatpush2.bf16.msra.mxu0 0
    %1873 = vmatprep.subr.bf16.mxu0 0
    %1874 = vmatpush2.bf16.msra.mxu0 0
    %1875 = vmatprep.subr.bf16.mxu0 0
    %1876 = vmatpush2.bf16.msra.mxu0 0
    %1877 = vmatprep.subr.bf16.mxu0 0
    %1878 = vmatpush2.bf16.msra.mxu0 0
    %1879 = vmatprep.subr.bf16.mxu0 0
    %1880 = vmatpush2.bf16.msra.mxu0 0
    %1881 = vmatprep.subr.bf16.mxu0 0
    %1882 = vmatpush2.bf16.msra.mxu0 0
    %1883 = vmatprep.mubr.bf16.mxu0 0
    %1884 = vmatmul.mubr.bf16.gmra.mxu0 %v1849
    %v1885 = vpop.f32.mrf.mxu0
    %v1886 = vadd.f32 0.0, %v1885
    %v1887 = vpop.f32.mrf.mxu0
    %v1888 = vpop.f32.mrf.mxu0
    %v1889 = vadd.f32 0.0, %v1888
    %v1890 = vpop.f32.mrf.mxu0
    %1891 = vdwg.mxu0
    %v1892 = vrcp.pop %v1886
    %v1893 = vrcp.pop %v1889
    %v1894 = vmul.f32 %v1844, %v1892
    %v1895 = vmul.f32 %v1846, %v1893
    %v1896 = vpack.c.bf16 %v1895, %v1894
    %v1898 = vsel %vm506, %v1896, 0
    %1900 = vmatprep.subr.bf16.mxu0 0
    %1901 = vmatpush1.bf16.msra.mxu0 0
    %1902 = vmatprep.subr.bf16.mxu0 0
    %1903 = vmatpush1.bf16.msra.mxu0 0
    %1904 = vmatprep.subr.bf16.mxu0 0
    %1905 = vmatpush1.bf16.msra.mxu0 0
    %1906 = vmatprep.subr.bf16.mxu0 0
    %1907 = vmatpush1.bf16.msra.mxu0 0
    %1908 = vmatprep.subr.bf16.mxu0 0
    %1909 = vmatpush1.bf16.msra.mxu0 %v369
    %1910 = vmatprep.subr.bf16.mxu0 0
    %1911 = vmatpush1.bf16.msra.mxu0 %v368
    %1912 = vmatprep.subr.bf16.mxu0 0
    %1913 = vmatpush1.bf16.msra.mxu0 %v367
    %1914 = vmatprep.subr.bf16.mxu0 0
    %1915 = vmatpush1.bf16.msra.mxu0 %v366
    %1916 = vmatprep.subr.bf16.mxu0 0
    %1917 = vmatpush2.bf16.msra.mxu0 0
    %1918 = vmatprep.subr.bf16.mxu0 0
    %1919 = vmatpush2.bf16.msra.mxu0 0
    %1920 = vmatprep.subr.bf16.mxu0 0
    %1921 = vmatpush2.bf16.msra.mxu0 0
    %1922 = vmatprep.subr.bf16.mxu0 0
    %1923 = vmatpush2.bf16.msra.mxu0 0
    %1924 = vmatprep.subr.bf16.mxu0 0
    %1925 = vmatpush2.bf16.msra.mxu0 0
    %1926 = vmatprep.subr.bf16.mxu0 0
    %1927 = vmatpush2.bf16.msra.mxu0 0
    %1928 = vmatprep.subr.bf16.mxu0 0
    %1929 = vmatpush2.bf16.msra.mxu0 0
    %1930 = vmatprep.subr.bf16.mxu0 0
    %1931 = vmatpush2.bf16.msra.mxu0 0
    %1932 = vmatprep.mubr.bf16.mxu0 0
    %1933 = vmatmul.mubr.bf16.gmra.mxu0 %v1898
    %v1934 = vpop.f32.mrf.mxu0
    %v1935 = vadd.f32 0.0, %v1934
    %v1936 = vpop.f32.mrf.mxu0
    %v1937 = vpop.f32.mrf.mxu0
    %v1938 = vadd.f32 0.0, %v1937
    %v1939 = vpop.f32.mrf.mxu0
    %1940 = vdwg.mxu0
    %v1941 = vpack.c.bf16 %v1938, %v1935
    %v1946 = vunpack.c.l.b16 %v1783
    %v1947 = vunpack.c.l.b16 %v1784
    %v1948 = vunpack.c.l.b16 %v1785
    %v1949 = vunpack.c.l.b16 %v1786
    %v1950 = vpack.c.b16 %v1947, %v1946
    %v1951 = vpack.c.b16 %v1949, %v1948
    %v1955 = vsel %vm299, %v1941, 0
    %1957 = vmatprep.subr.bf16.mxu0 0
    %1958 = vmatpush1.bf16.msra.mxu0 0
    %1959 = vmatprep.subr.bf16.mxu0 0
    %1960 = vmatpush1.bf16.msra.mxu0 0
    %1961 = vmatprep.subr.bf16.mxu0 0
    %1962 = vmatpush1.bf16.msra.mxu0 0
    %1963 = vmatprep.subr.bf16.mxu0 0
    %1964 = vmatpush1.bf16.msra.mxu0 0
    %1965 = vmatprep.subr.bf16.mxu0 0
    %1966 = vmatpush1.bf16.msra.mxu0 0
    %1967 = vmatprep.subr.bf16.mxu0 0
    %1968 = vmatpush1.bf16.msra.mxu0 0
    %1969 = vmatprep.subr.bf16.mxu0 0
    %1970 = vmatpush1.bf16.msra.mxu0 %v1951
    %1971 = vmatprep.subr.bf16.mxu0 0
    %1972 = vmatpush1.bf16.msra.mxu0 %v1950
    %1973 = vmatprep.subr.bf16.mxu0 0
    %1974 = vmatpush2.bf16.msra.mxu0 0
    %1975 = vmatprep.subr.bf16.mxu0 0
    %1976 = vmatpush2.bf16.msra.mxu0 0
    %1977 = vmatprep.subr.bf16.mxu0 0
    %1978 = vmatpush2.bf16.msra.mxu0 0
    %1979 = vmatprep.subr.bf16.mxu0 0
    %1980 = vmatpush2.bf16.msra.mxu0 0
    %1981 = vmatprep.subr.bf16.mxu0 0
    %1982 = vmatpush2.bf16.msra.mxu0 0
    %1983 = vmatprep.subr.bf16.mxu0 0
    %1984 = vmatpush2.bf16.msra.mxu0 0
    %1985 = vmatprep.subr.bf16.mxu0 0
    %1986 = vmatpush2.bf16.msra.mxu0 0
    %1987 = vmatprep.subr.bf16.mxu0 0
    %1988 = vmatpush2.bf16.msra.mxu0 0
    %1989 = vmatprep.mubr.bf16.mxu0 0
    %1990 = vmatmul.mubr.bf16.gmra.mxu0 %v1955
    %v1991 = vpop.f32.mrf.mxu0
    %v1992 = vadd.f32 0.0, %v1991
    %v1993 = vpop.f32.mrf.mxu0
    %v1994 = vpop.f32.mrf.mxu0
    %v1995 = vadd.f32 0.0, %v1994
    %v1996 = vpop.f32.mrf.mxu0
    %1997 = vdwg.mxu0
    %v1998 = vadd.f32 %v1717, %v1992
    %v1999 = vadd.f32 %v1718, %v1995
    %v2000 = vsel %vm299, %v1998, 0.0
    %2001 = vadd.xlane.f32.xlu0 %v2000
    %v2002 = vpop.xlane.xlu0 %2001
    %v2003 = vsel %vm299, %v1999, 0.0
    %2004 = vadd.xlane.f32.xlu0 %v2003
    %v2005 = vpop.xlane.xlu0 %2004
    %v2006 = vmul.f32 %v2002, %v750
    %v2007 = vmul.f32 %v2005, %v750
    %v2008 = vmul.f32 %v1998, %v1998
    %v2009 = vmul.f32 %v1999, %v1999
    %v2010 = vsel %vm299, %v2008, 0.0
    %2011 = vadd.xlane.f32.xlu0 %v2010
    %v2012 = vpop.xlane.xlu0 %2011
    %v2013 = vsel %vm299, %v2009, 0.0
    %2014 = vadd.xlane.f32.xlu0 %v2013
    %v2015 = vpop.xlane.xlu0 %2014
    %v2016 = vmul.f32 %v2012, %v750
    %v2017 = vmul.f32 %v2015, %v750
    %v2018 = vmul.f32 %v2006, %v2006
    %v2019 = vmul.f32 %v2007, %v2007
    %v2020 = vsub.f32 %v2016, %v2018
    %v2021 = vsub.f32 %v2017, %v2019
    %v2022 = vsub.f32 %v1998, %v2006
    %v2023 = vsub.f32 %v1999, %v2007
    %v2024 = vadd.f32 %v2020, 1e-05
    %v2025 = vadd.f32 %v2021, 1e-05
    %v2026 = vrsqrt.pop %v2024
    %v2027 = vrsqrt.pop %v2025
    %v2028 = vmul.f32 %v2022, %v2026
    %v2029 = vmul.f32 %v2023, %v2027
    %v2030 = vlaneseq
    %v2031 = vshrl.u32 %v2030, 7
    %v2032 = vsub.s32 4, %v2031
    %v2033 = vrot.slane %v1325, %v2032
    %v2034 = vmul.f32 %v2028, %v2033
    %v2035 = vmul.f32 %v2029, %v2033
    %v2036 = vlaneseq
    %v2037 = vshrl.u32 %v2036, 7
    %v2038 = vsub.s32 5, %v2037
    %v2039 = vrot.slane %v1325, %v2038
    %v2040 = vadd.f32 %v2034, %v2039
    %v2041 = vadd.f32 %v2035, %v2039
    %v2042 = vpack.c.bf16 %v2041, %v2040
    %s2043 = scalar_lea.vmem [#allocation22], 16
    %v2044 = vld [vmem:[%s2043] sm:$0xf]
    %v2045 = vld [vmem:[%s2043 + $0x4] sm:$0xf]
    %v2046 = vld [vmem:[%s2043 + $0x8] sm:$0xf]
    %v2047 = vld [vmem:[%s2043 + $0xc] sm:$0xf]
    %v2048 = vlaneseq
    %v2049 = vshrl.u32 %v2048, 7
    %v2050 = vsub.s32 0, %v2049
    %v2051 = vrot.slane %v1325, %v2050
    %v2056 = vunpack.c.l.b16 %v2044
    %v2057 = vunpack.c.l.b16 %v2045
    %v2058 = vunpack.c.l.b16 %v2046
    %v2059 = vunpack.c.l.b16 %v2047
    %v2060 = vpack.c.b16 %v2057, %v2056
    %v2061 = vpack.c.b16 %v2059, %v2058
    %v2065 = vsel %vm299, %v2042, 0
    %2067 = vmatprep.subr.bf16.mxu0 0
    %2068 = vmatpush1.bf16.msra.mxu0 0
    %2069 = vmatprep.subr.bf16.mxu0 0
    %2070 = vmatpush1.bf16.msra.mxu0 0
    %2071 = vmatprep.subr.bf16.mxu0 0
    %2072 = vmatpush1.bf16.msra.mxu0 0
    %2073 = vmatprep.subr.bf16.mxu0 0
    %2074 = vmatpush1.bf16.msra.mxu0 0
    %2075 = vmatprep.subr.bf16.mxu0 0
    %2076 = vmatpush1.bf16.msra.mxu0 0
    %2077 = vmatprep.subr.bf16.mxu0 0
    %2078 = vmatpush1.bf16.msra.mxu0 0
    %2079 = vmatprep.subr.bf16.mxu0 0
    %2080 = vmatpush1.bf16.msra.mxu0 %v2061
    %2081 = vmatprep.subr.bf16.mxu0 0
    %2082 = vmatpush1.bf16.msra.mxu0 %v2060
    %2083 = vmatprep.subr.bf16.mxu0 0
    %2084 = vmatpush2.bf16.msra.mxu0 0
    %2085 = vmatprep.subr.bf16.mxu0 0
    %2086 = vmatpush2.bf16.msra.mxu0 0
    %2087 = vmatprep.subr.bf16.mxu0 0
    %2088 = vmatpush2.bf16.msra.mxu0 0
    %2089 = vmatprep.subr.bf16.mxu0 0
    %2090 = vmatpush2.bf16.msra.mxu0 0
    %2091 = vmatprep.subr.bf16.mxu0 0
    %2092 = vmatpush2.bf16.msra.mxu0 0
    %2093 = vmatprep.subr.bf16.mxu0 0
    %2094 = vmatpush2.bf16.msra.mxu0 0
    %2095 = vmatprep.subr.bf16.mxu0 0
    %2096 = vmatpush2.bf16.msra.mxu0 0
    %2097 = vmatprep.subr.bf16.mxu0 0
    %2098 = vmatpush2.bf16.msra.mxu0 0
    %2099 = vmatprep.mubr.bf16.mxu0 0
    %2100 = vmatmul.mubr.bf16.gmra.mxu0 %v2065
    %v2101 = vpop.f32.mrf.mxu0
    %v2102 = vadd.f32 %v2051, %v2101
    %v2103 = vpop.f32.mrf.mxu0
    %v2104 = vpop.f32.mrf.mxu0
    %v2105 = vadd.f32 %v2051, %v2104
    %v2106 = vpop.f32.mrf.mxu0
    %2107 = vdwg.mxu0
    %v2108 = vmax.f32 %v2102, 0.0
    %v2109 = vmax.f32 %v2105, 0.0
    %v2110 = vpack.c.bf16 %v2109, %v2108
    %s2111 = scalar_lea.vmem %s15, 32
    %v2112 = vld [vmem:[%s2111] sm:$0xf]
    %v2113 = vld [vmem:[%s2111 + $0x4] sm:$0xf]
    %v2114 = vld [vmem:[%s2111 + $0x8] sm:$0xf]
    %v2115 = vld [vmem:[%s2111 + $0xc] sm:$0xf]
    %v2116 = vld [vmem:[%s2111 + $0x10] sm:$0xf]
    %v2117 = vld [vmem:[%s2111 + $0x14] sm:$0xf]
    %v2118 = vld [vmem:[%s2111 + $0x18] sm:$0xf]
    %v2119 = vld [vmem:[%s2111 + $0x1c] sm:$0xf]
    %v2120 = vlaneseq
    %v2121 = vshrl.u32 %v2120, 7
    %v2122 = vsub.s32 1, %v2121
    %v2123 = vrot.slane %v1325, %v2122
    %v2132 = vunpack.c.l.b16 %v2112
    %v2133 = vunpack.c.l.b16 %v2113
    %v2134 = vunpack.c.l.b16 %v2114
    %v2135 = vunpack.c.l.b16 %v2115
    %v2136 = vunpack.c.l.b16 %v2116
    %v2137 = vunpack.c.l.b16 %v2117
    %v2138 = vunpack.c.l.b16 %v2118
    %v2139 = vunpack.c.l.b16 %v2119
    %v2140 = vpack.c.b16 %v2133, %v2132
    %v2141 = vpack.c.b16 %v2135, %v2134
    %v2142 = vpack.c.b16 %v2137, %v2136
    %v2143 = vpack.c.b16 %v2139, %v2138
    %v2149 = vsel %vm506, %v2110, 0
    %2151 = vmatprep.subr.bf16.mxu0 0
    %2152 = vmatpush1.bf16.msra.mxu0 0
    %2153 = vmatprep.subr.bf16.mxu0 0
    %2154 = vmatpush1.bf16.msra.mxu0 0
    %2155 = vmatprep.subr.bf16.mxu0 0
    %2156 = vmatpush1.bf16.msra.mxu0 0
    %2157 = vmatprep.subr.bf16.mxu0 0
    %2158 = vmatpush1.bf16.msra.mxu0 0
    %2159 = vmatprep.subr.bf16.mxu0 0
    %2160 = vmatpush1.bf16.msra.mxu0 %v2143
    %2161 = vmatprep.subr.bf16.mxu0 0
    %2162 = vmatpush1.bf16.msra.mxu0 %v2142
    %2163 = vmatprep.subr.bf16.mxu0 0
    %2164 = vmatpush1.bf16.msra.mxu0 %v2141
    %2165 = vmatprep.subr.bf16.mxu0 0
    %2166 = vmatpush1.bf16.msra.mxu0 %v2140
    %2167 = vmatprep.subr.bf16.mxu0 0
    %2168 = vmatpush2.bf16.msra.mxu0 0
    %2169 = vmatprep.subr.bf16.mxu0 0
    %2170 = vmatpush2.bf16.msra.mxu0 0
    %2171 = vmatprep.subr.bf16.mxu0 0
    %2172 = vmatpush2.bf16.msra.mxu0 0
    %2173 = vmatprep.subr.bf16.mxu0 0
    %2174 = vmatpush2.bf16.msra.mxu0 0
    %2175 = vmatprep.subr.bf16.mxu0 0
    %2176 = vmatpush2.bf16.msra.mxu0 0
    %2177 = vmatprep.subr.bf16.mxu0 0
    %2178 = vmatpush2.bf16.msra.mxu0 0
    %2179 = vmatprep.subr.bf16.mxu0 0
    %2180 = vmatpush2.bf16.msra.mxu0 0
    %2181 = vmatprep.subr.bf16.mxu0 0
    %2182 = vmatpush2.bf16.msra.mxu0 0
    %2183 = vmatprep.mubr.bf16.mxu0 0
    %2184 = vmatmul.mubr.bf16.gmra.mxu0 %v2149
    %v2185 = vpop.f32.mrf.mxu0
    %v2186 = vadd.f32 %v2123, %v2185
    %v2187 = vpop.f32.mrf.mxu0
    %v2188 = vpop.f32.mrf.mxu0
    %v2189 = vadd.f32 %v2123, %v2188
    %v2190 = vpop.f32.mrf.mxu0
    %2191 = vdwg.mxu0
    %v2192 = vadd.f32 %v2040, %v2186
    %v2193 = vadd.f32 %v2041, %v2189
    %v2194 = vsel %vm299, %v2192, 0.0
    %2195 = vadd.xlane.f32.xlu0 %v2194
    %v2196 = vpop.xlane.xlu0 %2195
    %v2197 = vsel %vm299, %v2193, 0.0
    %2198 = vadd.xlane.f32.xlu0 %v2197
    %v2199 = vpop.xlane.xlu0 %2198
    %v2200 = vmul.f32 %v2196, %v750
    %v2201 = vmul.f32 %v2199, %v750
    %v2202 = vmul.f32 %v2192, %v2192
    %v2203 = vmul.f32 %v2193, %v2193
    %v2204 = vsel %vm299, %v2202, 0.0
    %2205 = vadd.xlane.f32.xlu0 %v2204
    %v2206 = vpop.xlane.xlu0 %2205
    %v2207 = vsel %vm299, %v2203, 0.0
    %2208 = vadd.xlane.f32.xlu0 %v2207
    %v2209 = vpop.xlane.xlu0 %2208
    %v2210 = vmul.f32 %v2206, %v750
    %v2211 = vmul.f32 %v2209, %v750
    %v2212 = vmul.f32 %v2200, %v2200
    %v2213 = vmul.f32 %v2201, %v2201
    %v2214 = vsub.f32 %v2210, %v2212
    %v2215 = vsub.f32 %v2211, %v2213
    %v2216 = vsub.f32 %v2192, %v2200
    %v2217 = vsub.f32 %v2193, %v2201
    %v2218 = vadd.f32 %v2214, 1e-05
    %v2219 = vadd.f32 %v2215, 1e-05
    %v2220 = vrsqrt.pop %v2218
    %v2221 = vrsqrt.pop %v2219
    %v2222 = vmul.f32 %v2216, %v2220
    %v2223 = vmul.f32 %v2217, %v2221
    %v2224 = vlaneseq
    %v2225 = vshrl.u32 %v2224, 7
    %v2226 = vsub.s32 6, %v2225
    %v2227 = vrot.slane %v1325, %v2226
    %v2228 = vmul.f32 %v2222, %v2227
    %v2229 = vmul.f32 %v2223, %v2227
    %v2230 = vlaneseq
    %v2231 = vshrl.u32 %v2230, 7
    %v2232 = vsub.s32 7, %v2231
    %v2233 = vrot.slane %v1325, %v2232
    %v2234 = vadd.f32 %v2228, %v2233
    %v2235 = vadd.f32 %v2229, %v2233
    %2236 = vst.msk [vmem:[#allocation23] sm:$0xff] %vm299, %v2234
    %2237 = vst.msk [vmem:[#allocation23 + $0x8] sm:$0xff] %vm299, %v2235
    // Predicated region
    $region122: #{decoder_forward.1} parent=1 // pred_check
      _
    $region123: #{decoder_forward.1} parent=1 // pred_check_branch
      %2239 = sbr.rel (0) target = $region125
    $region124: #{decoder_forward.1} parent=1 // pred_region
      %s2241 = ssub.s32 256, 256
      %2242 = vsyncadd [#allocation4], %s2241
      %s2243 = sshll.u32 [#allocation23], 4
      %s2244 = int_to_ptr.vmem [resolvable:$true] %s2243
      %2249 = dma.vmem_to_hbm [thread:$0]  %s2244, 256, %s17, [#allocation4], 128, 128, 8
    $region125: #{decoder_forward.1} parent=1 // pred_fallthru
      _
    // Predicated region
    $region126: #{decoder_forward.1} parent=1 // pred_check
      _
    $region127: #{decoder_forward.1} parent=1 // pred_check_branch
      %2251 = sbr.rel (0) target = $region129
    $region128: #{decoder_forward.1} parent=1 // pred_region
      %2252 = dma.done [#allocation4], 256
    $region129: #{decoder_forward.1} parent=1 // pred_fallthru
      _
    %2253 = vsyncpa [#allocation3], 1
    %2254 = vsyncpa [#allocation6], 1
    %2255 = vsyncpa [#allocation9], 1
    %2256 = vsyncpa [#allocation12], 1
    %2257 = vsyncpa [#allocation15], 1
    %2258 = vsyncpa [#allocation18], 1
    %2259 = vsyncpa [#allocation21], 1
    %2260 = vsyncpa [#allocation4], 1

</llo_original>
